<compile_context>
chip_gen: v5e
topology: v5e:2x2
jax: 0.10.0
libtpu: 0.0.40
codegen_flags: <defaults>
</compile_context>

<pallas_src>
import jax
import jax.numpy as jnp
from jax import lax
from jax.experimental import pallas as pl
from jax.experimental.pallas import tpu as pltpu

ANSWER_TYPE_NUMBER = 5
_PLOSS_LANES = 128  # lane-dense width of the per-tile partial-loss output


# ----------------------------------------------------------------------------
# Pallas kernel: classification head (logits + partial cross-entropy sums)
# ----------------------------------------------------------------------------
def _make_head_kernel(valid_batch):
    """Builds the kernel closed over the (static) number of valid batch rows."""

    def kernel(
        seq_ref,           # VMEM [Bt, S, H]  bf16  sequence hidden states (tile)
        cls_ref,           # VMEM [Bt, H]     bf16  pooled [CLS] hidden (tile)
        w_se_ref,          # VMEM [H, 2]      bf16  col0=w_start, col1=w_end
        w_type_ref,        # VMEM [H, T]      bf16  type projection (transposed vs torch)
        b_se_ref,          # SMEM [2]         f32   (b_start, b_end)
        b_type_ref,        # VMEM [1, T]      f32
        labels_ref,        # VMEM [Bt, 3]     i32   (start, end, type)
        start_logits_ref,  # VMEM [Bt, S]     f32   (out)
        end_logits_ref,    # VMEM [Bt, S]     f32   (out)
        type_logits_ref,   # VMEM [Bt, T]     f32   (out)
        ploss_ref,         # VMEM [1, 1, 128] f32   (out) lanes 0..2 = partial CE sums
    ):
        Bt, S, H = seq_ref.shape

        # Both H->1 projections in one MXU matmul against the packed [H,2]
        # weight (MXU pads N to 128 internally; no cross-lane XLU reductions).
        seq2d = seq_ref[...].reshape(Bt * S, H)
        proj = jnp.dot(seq2d, w_se_ref[...],
                       preferred_element_type=jnp.float32)      # [Bt*S, 2] f32
        proj3 = proj.reshape(Bt, S, 2)

        # Bias added AFTER slicing (2*Bt*S scalar adds instead of Bt*S*128).
        start_logits = proj3[:, :, 0] + b_se_ref[0]              # [Bt, S]
        end_logits = proj3[:, :, 1] + b_se_ref[1]                # [Bt, S]

        # Linear(H -> T) on the pooled [CLS] hidden state (MXU).
        type_logits = (
            jnp.dot(cls_ref[...], w_type_ref[...],
                    preferred_element_type=jnp.float32)
            + b_type_ref[...]
        )                                                        # [Bt, T]

        start_logits_ref[...] = start_logits
        end_logits_ref[...] = end_logits
        type_logits_ref[...] = type_logits

        # Mask batch-padding rows out of the loss partial sums.
        row0 = pl.program_id(0) * Bt
        rows = row0 + lax.broadcasted_iota(jnp.int32, (Bt, 1), 0)
        row_valid = rows < valid_batch                           # [Bt, 1] bool

        def ce_partial_sum(logits, labels):
            # SUM over valid rows of this tile of (logsumexp(logits) - logits[label]).
            # The mean over the GLOBAL batch is taken outside the kernel.
            m = jnp.max(logits, axis=-1, keepdims=True)
            lse = jnp.log(jnp.sum(jnp.exp(logits - m), axis=-1, keepdims=True)) + m
            sel = lax.broadcasted_iota(jnp.int32, logits.shape, 1) == labels
            picked = jnp.sum(jnp.where(sel, logits, 0.0), axis=-1, keepdims=True)
            per_row = lse - picked
            return jnp.sum(jnp.where(row_valid, per_row, 0.0))

        s_part = ce_partial_sum(start_logits, labels_ref[:, 0:1])
        e_part = ce_partial_sum(end_logits, labels_ref[:, 1:2])
        t_part = ce_partial_sum(type_logits, labels_ref[:, 2:3])

        lane = lax.broadcasted_iota(jnp.int32, (1, 1, _PLOSS_LANES), 2)
        ploss_ref[...] = jnp.where(
            lane == 0, s_part,
            jnp.where(lane == 1, e_part,
                      jnp.where(lane == 2, t_part, 0.0)))

    return kernel


# ----------------------------------------------------------------------------
# Wrapper: VMEM budgeting, tile sizing, weight packing, pallas_call
# ----------------------------------------------------------------------------
def _pick_vmem_limit_bytes():
    cap = None
    try:
        cap = getattr(pltpu.get_tpu_info(), "vmem_capacity_bytes", None)
    except Exception:
        cap = None
    if not cap:
        cap = 64 * 1024 * 1024      # conservative fallback (v7x per-TC VMEM)
    # ~96 MiB on 128-MiB parts (v5e/v6e), ~48 MiB on v7x's 64 MiB.
    return int(min(100 * 1024 * 1024, (cap * 3) // 4))


def _choose_batch_tile(B, S, H, T, vmem_limit, seq_itemsize=2):
    # Bytes per batch row that the pipeline double-buffers.
    per_row = (S * H * seq_itemsize      # seq tile (bf16)
               + H * seq_itemsize        # cls tile (bf16)
               + 128 * 4                 # merged labels (i32, lane-padded)
               + 2 * S * 4               # start/end logits outputs (f32)
               + 128 * 4)                # type logits output (lane-padded f32)
    # Resident weights/biases (also double-buffered by BlockSpec) + headroom
    # for compiler internal scratch.
    resident = 2 * (H * 2 * seq_itemsize + H * T * seq_itemsize + 2 * 128 * 4)
    resident += 4 << 20
    budget = max(per_row, (vmem_limit * 3) // 4 - resident)
    bt_fit = budget // (2 * per_row)                       # fits double-buffered in VMEM
    bt_bw = max(1, (2 << 20) // (S * H * seq_itemsize))    # ~2 MiB seq DMA per step
    bt_steps = max(1, -(-B // 4))                          # aim for >= 4 grid steps
    bt = min(bt_fit, bt_bw, bt_steps)
    bt = max(8, (bt // 8) * 8)                             # (8,128)-friendly sublane tiles
    return int(bt)


def classification_head(seq_hidden, cls_hidden, params,
                        start_positions, end_positions, types,
                        batch_tile=None):
    B, S, H = seq_hidden.shape
    T = ANSWER_TYPE_NUMBER
    vmem_limit = _pick_vmem_limit_bytes()

    if batch_tile is None:
        batch_tile = _choose_batch_tile(B, S, H, T, vmem_limit)
    bt = max(8, (int(batch_tile) // 8) * 8)
    num_blocks = pl.cdiv(B, bt)
    B_pad = num_blocks * bt

    # bf16 activations into the kernel (halves the dominant HBM read); the
    # stub encoder already emits bf16 so these casts are no-ops.
    seq_bf = seq_hidden.astype(jnp.bfloat16)
    cls_bf = cls_hidden.astype(jnp.bfloat16)
    labels = jnp.stack([start_positions, end_positions, types],
                       axis=1).astype(jnp.int32)                 # [B, 3]

    if B_pad != B:
        pad = B_pad - B
        seq_bf = jnp.pad(seq_bf, ((0, pad), (0, 0), (0, 0)))
        cls_bf = jnp.pad(cls_bf, ((0, pad), (0, 0)))
        labels = jnp.pad(labels, ((0, pad), (0, 0)))

    # Packed start/end weight [H, 2] bf16 (cols 0/1), biases as SMEM scalars.
    w_se = jnp.stack([params["w_start"][0], params["w_end"][0]],
                     axis=1).astype(jnp.bfloat16)                # [H, 2]
    w_type = params["w_type"].astype(jnp.bfloat16)               # [H, T]
    b_se = jnp.stack([params["b_start"][0], params["b_end"][0]]
                     ).astype(jnp.float32)                       # [2]
    b_type = params["b_type"].astype(jnp.float32).reshape(1, T)  # [1, T]

    in_specs = [
        pl.BlockSpec((bt, S, H), lambda b: (b, 0, 0)),           # seq (streamed tile)
        pl.BlockSpec((bt, H), lambda b: (b, 0)),                 # cls
        pl.BlockSpec((H, 2), lambda b: (0, 0)),                  # packed start/end weight
        pl.BlockSpec((H, T), lambda b: (0, 0)),                  # type weight
        pl.BlockSpec(memory_space=pltpu.MemorySpace.SMEM),       # start/end biases (scalars)
        pl.BlockSpec((1, T), lambda b: (0, 0)),                  # type bias
        pl.BlockSpec((bt, 3), lambda b: (b, 0)),                 # merged labels
    ]
    out_specs = (
        pl.BlockSpec((bt, S), lambda b: (b, 0)),                 # start_logits
        pl.BlockSpec((bt, S), lambda b: (b, 0)),                 # end_logits
        pl.BlockSpec((bt, T), lambda b: (b, 0)),                 # type_logits
        pl.BlockSpec((1, 1, _PLOSS_LANES), lambda b: (b, 0, 0)), # per-tile CE partials
    )
    out_shapes = (
        jax.ShapeDtypeStruct((B_pad, S), jnp.float32),
        jax.ShapeDtypeStruct((B_pad, S), jnp.float32),
        jax.ShapeDtypeStruct((B_pad, T), jnp.float32),
        jax.ShapeDtypeStruct((num_blocks, 1, _PLOSS_LANES), jnp.float32),
    )

    start_logits, end_logits, type_logits, ploss = pl.pallas_call(
        _make_head_kernel(B),
        out_shape=out_shapes,
        grid=(num_blocks,),
        in_specs=in_specs,
        out_specs=out_specs,
        compiler_params=pltpu.CompilerParams(
            dimension_semantics=("parallel",),   # shard batch tiles across cores
            vmem_limit_bytes=vmem_limit,
        ),
    )(seq_bf, cls_bf, w_se, w_type, b_se, b_type, labels)

    # Per-head mean over the GLOBAL batch, then mean of the three heads.
    loss = jnp.sum(ploss[:, 0, :3]) / (3.0 * B)
    return start_logits[:B], end_logits[:B], type_logits[:B], loss


# ----------------------------------------------------------------------------
# Plain-JAX glue: deterministic stub encoder + full forward matching the module
# ----------------------------------------------------------------------------
def stub_encoder(params, input_ids, input_mask, segment_ids):
    # TODO(synk): the real module uses an external BERT encoder; ideally this
    # head would be fused into the encoder's last layer so [B,S,H] never
    # round-trips through HBM.  Here: deterministic embedding + pooler stub
    # that emits bf16 activations (halves the kernel's HBM read).
    tok = params["tok_emb"][input_ids]                          # [B, S, H]
    seg = params["seg_emb"][segment_ids]                        # [B, S, H]
    pos = params["pos_emb"][None, : input_ids.shape[1]]         # [1, S, H]
    hidden = jnp.tanh(tok + seg + pos) * input_mask[..., None].astype(jnp.float32)
    cls = jnp.tanh(hidden[:, 0] @ params["w_pool"] + params["b_pool"])  # [B, H]
    return hidden.astype(jnp.bfloat16), cls.astype(jnp.bfloat16)


def classification_forward(params, best_n_size, unique_index, input_ids,
                           input_mask, segment_ids, start_positions,
                           end_positions, types, batch_tile=None):
    seq_hidden, cls_hidden = stub_encoder(params, input_ids, input_mask, segment_ids)
    start_logits, end_logits, type_logits, loss = classification_head(
        seq_hidden, cls_hidden, params, start_positions, end_positions, types,
        batch_tile=batch_tile)

    logits = {"start_logits": start_logits,
              "end_logits": end_logits,
              "type_logits": type_logits}

    # torch.topk / argmax predictions: no clean Pallas top-k; done in plain JAX.
    start_predictions = jax.lax.top_k(start_logits[:, 1:], best_n_size)
    end_predictions = jax.lax.top_k(end_logits[:, 1:], best_n_size)
    type_predictions = jnp.argmax(type_logits, axis=1)
    predictions = {"start_predictions": start_predictions,
                   "end_predictions": end_predictions,
                   "type_predictions": type_predictions}
    return loss, logits, predictions, unique_index


def truncated_normal(key, shape, std=0.02):
    return std * jax.random.truncated_normal(key, -2.0, 2.0, shape, jnp.float32)


# ----------------------------------------------------------------------------
# Main
# ----------------------------------------------------------------------------
if __name__ == "__main__":
    B, S, H, T = 12, 16, 32, ANSWER_TYPE_NUMBER   # B=12 exercises batch padding
    VOCAB = 64
    BEST_N_SIZE = 3
    BATCH_TILE = 8        # exercise a real 2-step batch grid at toy size

    key = jax.random.PRNGKey(0)
    ks = jax.random.split(key, 12)

    params = {
        # stub encoder params
        "tok_emb": 0.02 * jax.random.normal(ks[0], (VOCAB, H), jnp.float32),
        "seg_emb": 0.02 * jax.random.normal(ks[1], (2, H), jnp.float32),
        "pos_emb": 0.02 * jax.random.normal(ks[2], (S, H), jnp.float32),
        "w_pool": 0.02 * jax.random.normal(ks[3], (H, H), jnp.float32),
        "b_pool": jnp.zeros((H,), jnp.float32),
        # classification head params (truncated-normal weights, zero biases)
        "w_start": truncated_normal(ks[4], (1, H)),
        "w_end": truncated_normal(ks[5], (1, H)),
        "w_type": truncated_normal(ks[6], (H, T)),   # transposed vs torch [T, H]
        "b_start": jnp.zeros((1,), jnp.float32),
        "b_end": jnp.zeros((1,), jnp.float32),
        "b_type": jnp.zeros((1, T), jnp.float32),
    }

    unique_index = jnp.arange(B, dtype=jnp.int32)
    input_ids = jax.random.randint(ks[7], (B, S), 0, VOCAB, dtype=jnp.int32)
    input_mask = jnp.ones((B, S), jnp.int32)
    segment_ids = jnp.zeros((B, S), jnp.int32)
    start_positions = jax.random.randint(ks[8], (B,), 0, S, dtype=jnp.int32)
    end_positions = jax.random.randint(ks[9], (B,), 0, S, dtype=jnp.int32)
    types = jax.random.randint(ks[10], (B,), 0, T, dtype=jnp.int32)

    loss, logits, predictions, uidx = classification_forward(
        params, BEST_N_SIZE, unique_index, input_ids, input_mask, segment_ids,
        start_positions, end_positions, types, batch_tile=BATCH_TILE)
    jax.block_until_ready((loss, logits, predictions, uidx))

    # ---- reference check against plain JAX (f32 weights on bf16 hidden) ----
    seq_hidden, cls_hidden = stub_encoder(params, input_ids, input_mask, segment_ids)
    seq_f32 = seq_hidden.astype(jnp.float32)
    cls_f32 = cls_hidden.astype(jnp.float32)
    ref_start = jnp.einsum("bsh,h->bs", seq_f32, params["w_start"][0]) + params["b_start"][0]
    ref_end = jnp.einsum("bsh,h->bs", seq_f32, params["w_end"][0]) + params["b_end"][0]
    ref_type = cls_f32 @ params["w_type"] + params["b_type"][0]

    def ref_ce(lg, lab):
        lse = jax.nn.logsumexp(lg, axis=-1)
        picked = jnp.take_along_axis(lg, lab[:, None], axis=-1)[:, 0]
        return jnp.mean(lse - picked)

    ref_loss = (ref_ce(ref_start, start_positions)
                + ref_ce(ref_end, end_positions)
                + ref_ce(ref_type, types)) / 3.0

    # bf16 weights in the kernel -> loosened tolerances vs the f32 reference.
    assert jnp.allclose(logits["start_logits"], ref_start, atol=5e-3, rtol=5e-2)
    assert jnp.allclose(logits["end_logits"], ref_end, atol=5e-3, rtol=5e-2)
    assert jnp.allclose(logits["type_logits"], ref_type, atol=5e-3, rtol=5e-2)
    assert jnp.allclose(loss, ref_loss, atol=5e-3, rtol=5e-2)

    print("KERNEL_OK")
</pallas_src>

<mosaic_0001>
module attributes {stable_mosaic.version = 11 : i64} {
  func.func @kernel(%arg0: i32, %arg1: memref<8x16x32xbf16, #tpu.memory_space<vmem>>, %arg2: memref<8x32xbf16, #tpu.memory_space<vmem>>, %arg3: memref<32x2xbf16, #tpu.memory_space<vmem>>, %arg4: memref<32x5xbf16, #tpu.memory_space<vmem>>, %arg5: memref<2xf32, #tpu.memory_space<smem>>, %arg6: memref<1x5xf32, #tpu.memory_space<vmem>>, %arg7: memref<8x3xi32, #tpu.memory_space<vmem>>, %arg8: memref<8x16xf32, #tpu.memory_space<vmem>>, %arg9: memref<8x16xf32, #tpu.memory_space<vmem>>, %arg10: memref<8x5xf32, #tpu.memory_space<vmem>>, %arg11: memref<1x1x128xf32, #tpu.memory_space<vmem>>) attributes {dimension_semantics = [#tpu.dimension_semantics<parallel>], iteration_bounds = array<i64: 2>, scalar_prefetch = 0 : i64, scratch_operands = 0 : i64, tpu.core_type = #tpu.core_type<tc>, window_params = [{transform_indices = @transform_0, window_bounds = array<i64: 8, 16, 32>}, {transform_indices = @transform_1, window_bounds = array<i64: 8, 32>}, {pipeline_mode = #tpu.pipeline_mode<synchronous>, transform_indices = @transform_2, window_bounds = array<i64: 32, 2>}, {pipeline_mode = #tpu.pipeline_mode<synchronous>, transform_indices = @transform_3, window_bounds = array<i64: 32, 5>}, {transform_indices = @transform_4, window_bounds = array<i64: 2>}, {pipeline_mode = #tpu.pipeline_mode<synchronous>, transform_indices = @transform_5, window_bounds = array<i64: 1, 5>}, {transform_indices = @transform_6, window_bounds = array<i64: 8, 3>}, {transform_indices = @transform_7, window_bounds = array<i64: 8, 16>}, {transform_indices = @transform_8, window_bounds = array<i64: 8, 16>}, {transform_indices = @transform_9, window_bounds = array<i64: 8, 5>}, {transform_indices = @transform_10, window_bounds = array<i64: 1, 1, 128>}]} {
    %c0 = arith.constant 0 : index
    %c0_0 = arith.constant 0 : index
    %c0_1 = arith.constant 0 : index
    %0 = vector.load %arg1[%c0, %c0_0, %c0_1] : memref<8x16x32xbf16, #tpu.memory_space<vmem>>, vector<8x16x32xbf16>
    %1 = vector.shape_cast %0 : vector<8x16x32xbf16> to vector<128x32xbf16>
    %c0_2 = arith.constant 0 : index
    %c0_3 = arith.constant 0 : index
    %2 = vector.load %arg3[%c0_2, %c0_3] : memref<32x2xbf16, #tpu.memory_space<vmem>>, vector<32x2xbf16>
    %cst = arith.constant dense<0.000000e+00> : vector<128x2xf32>
    %3 = tpu.matmul %1, %2, %cst {dimension_numbers = #tpu.dot_dimension_numbers<[1], [0], [0], [1], [0, 0, 1, 1], [], []>} : vector<128x32xbf16>, vector<32x2xbf16>, vector<128x2xf32> -> vector<128x2xf32>
    %4 = vector.shape_cast %3 : vector<128x2xf32> to vector<8x16x2xf32>
    %5 = vector.extract_strided_slice %4 {offsets = [0, 0, 0], sizes = [8, 16, 1], strides = [1, 1, 1]} : vector<8x16x2xf32> to vector<8x16x1xf32>
    %6 = vector.shape_cast %5 : vector<8x16x1xf32> to vector<8x16xf32>
    %c0_4 = arith.constant 0 : index
    %7 = memref.load %arg5[%c0_4] : memref<2xf32, #tpu.memory_space<smem>>
    %8 = vector.broadcast %7 : f32 to vector<8x16xf32>
    %9 = arith.addf %6, %8 : vector<8x16xf32>
    %10 = vector.extract_strided_slice %4 {offsets = [0, 0, 1], sizes = [8, 16, 1], strides = [1, 1, 1]} : vector<8x16x2xf32> to vector<8x16x1xf32>
    %11 = vector.shape_cast %10 : vector<8x16x1xf32> to vector<8x16xf32>
    %c1 = arith.constant 1 : index
    %12 = memref.load %arg5[%c1] : memref<2xf32, #tpu.memory_space<smem>>
    %13 = vector.broadcast %12 : f32 to vector<8x16xf32>
    %14 = arith.addf %11, %13 : vector<8x16xf32>
    %c0_5 = arith.constant 0 : index
    %c0_6 = arith.constant 0 : index
    %15 = vector.load %arg2[%c0_5, %c0_6] : memref<8x32xbf16, #tpu.memory_space<vmem>>, vector<8x32xbf16>
    %c0_7 = arith.constant 0 : index
    %c0_8 = arith.constant 0 : index
    %16 = vector.load %arg4[%c0_7, %c0_8] : memref<32x5xbf16, #tpu.memory_space<vmem>>, vector<32x5xbf16>
    %cst_9 = arith.constant dense<0.000000e+00> : vector<8x5xf32>
    %17 = tpu.matmul %15, %16, %cst_9 {dimension_numbers = #tpu.dot_dimension_numbers<[1], [0], [0], [1], [0, 0, 1, 1], [], []>} : vector<8x32xbf16>, vector<32x5xbf16>, vector<8x5xf32> -> vector<8x5xf32>
    %c0_10 = arith.constant 0 : index
    %c0_11 = arith.constant 0 : index
    %18 = vector.load %arg6[%c0_10, %c0_11] : memref<1x5xf32, #tpu.memory_space<vmem>>, vector<1x5xf32>
    %19 = vector.broadcast %18 : vector<1x5xf32> to vector<8x5xf32>
    %20 = arith.addf %17, %19 : vector<8x5xf32>
    %c0_12 = arith.constant 0 : index
    %c0_13 = arith.constant 0 : index
    %21 = vector.load %arg8[%c0_12, %c0_13] : memref<8x16xf32, #tpu.memory_space<vmem>>, vector<8x16xf32>
    tpu.vector_store %arg8[%c0_12, %c0_13], %9 {strides = array<i32>} : memref<8x16xf32, #tpu.memory_space<vmem>>, vector<8x16xf32>,
    %c0_14 = arith.constant 0 : index
    %c0_15 = arith.constant 0 : index
    %22 = vector.load %arg9[%c0_14, %c0_15] : memref<8x16xf32, #tpu.memory_space<vmem>>, vector<8x16xf32>
    tpu.vector_store %arg9[%c0_14, %c0_15], %14 {strides = array<i32>} : memref<8x16xf32, #tpu.memory_space<vmem>>, vector<8x16xf32>,
    %c0_16 = arith.constant 0 : index
    %c0_17 = arith.constant 0 : index
    %23 = vector.load %arg10[%c0_16, %c0_17] : memref<8x5xf32, #tpu.memory_space<vmem>>, vector<8x5xf32>
    tpu.vector_store %arg10[%c0_16, %c0_17], %20 {strides = array<i32>} : memref<8x5xf32, #tpu.memory_space<vmem>>, vector<8x5xf32>,
    %c8_i32 = arith.constant 8 : i32
    %24 = arith.muli %arg0, %c8_i32 : i32
    %25 = tpu.iota {dimensions = array<i32: 0>} : vector<8x1xi32>
    %26 = vector.broadcast %24 : i32 to vector<8x1xi32>
    %27 = arith.addi %26, %25 : vector<8x1xi32>
    %c12_i32 = arith.constant 12 : i32
    %28 = vector.broadcast %c12_i32 : i32 to vector<8x1xi32>
    %29 = arith.cmpi slt, %27, %28 : vector<8x1xi32>
    %c0_18 = arith.constant 0 : index
    %c0_19 = arith.constant 0 : index
    %30 = vector.load %arg7[%c0_18, %c0_19] : memref<8x3xi32, #tpu.memory_space<vmem>>, vector<8x1xi32>
    %cst_20 = arith.constant dense<0xFF800000> : vector<8xf32>
    %31 = vector.multi_reduction <maximumf>, %9, %cst_20 [1] : vector<8x16xf32> to vector<8xf32>
    %32 = vector.shape_cast %31 : vector<8xf32> to vector<8x1xf32>
    %33 = vector.broadcast %32 : vector<8x1xf32> to vector<8x16xf32>
    %34 = arith.subf %9, %33 : vector<8x16xf32>
    %35 = math.exp %34 : vector<8x16xf32>
    %cst_21 = arith.constant dense<0.000000e+00> : vector<8xf32>
    %36 = vector.multi_reduction <add>, %35, %cst_21 [1] : vector<8x16xf32> to vector<8xf32>
    %37 = vector.shape_cast %36 : vector<8xf32> to vector<8x1xf32>
    %38 = math.log %37 : vector<8x1xf32>
    %39 = arith.addf %38, %32 : vector<8x1xf32>
    %40 = tpu.iota {dimensions = array<i32: 1>} : vector<8x16xi32>
    %41 = vector.broadcast %30 : vector<8x1xi32> to vector<8x16xi32>
    %42 = arith.cmpi eq, %40, %41 : vector<8x16xi32>
    %cst_22 = arith.constant 0.000000e+00 : f32
    %43 = vector.broadcast %cst_22 : f32 to vector<8x16xf32>
    %44 = arith.select %42, %9, %43 : vector<8x16xi1>, vector<8x16xf32>
    %cst_23 = arith.constant dense<0.000000e+00> : vector<8xf32>
    %45 = vector.multi_reduction <add>, %44, %cst_23 [1] : vector<8x16xf32> to vector<8xf32>
    %46 = vector.shape_cast %45 : vector<8xf32> to vector<8x1xf32>
    %47 = arith.subf %39, %46 : vector<8x1xf32>
    %cst_24 = arith.constant 0.000000e+00 : f32
    %48 = vector.broadcast %cst_24 : f32 to vector<8x1xf32>
    %49 = arith.select %29, %47, %48 : vector<8x1xi1>, vector<8x1xf32>
    %50 = vector.shape_cast %49 : vector<8x1xf32> to vector<1x8x1xf32>
    %cst_25 = arith.constant dense<0.000000e+00> : vector<1xf32>
    %51 = vector.multi_reduction <add>, %50, %cst_25 [1, 2] : vector<1x8x1xf32> to vector<1xf32>
    %52 = vector.shape_cast %51 : vector<1xf32> to vector<1x1x1xf32>
    %53 = vector.extract %52[0, 0, 0] : f32 from vector<1x1x1xf32>
    %c0_26 = arith.constant 0 : index
    %c1_27 = arith.constant 1 : index
    %54 = vector.load %arg7[%c0_26, %c1_27] : memref<8x3xi32, #tpu.memory_space<vmem>>, vector<8x1xi32>
    %cst_28 = arith.constant dense<0xFF800000> : vector<8xf32>
    %55 = vector.multi_reduction <maximumf>, %14, %cst_28 [1] : vector<8x16xf32> to vector<8xf32>
    %56 = vector.shape_cast %55 : vector<8xf32> to vector<8x1xf32>
    %57 = vector.broadcast %56 : vector<8x1xf32> to vector<8x16xf32>
    %58 = arith.subf %14, %57 : vector<8x16xf32>
    %59 = math.exp %58 : vector<8x16xf32>
    %cst_29 = arith.constant dense<0.000000e+00> : vector<8xf32>
    %60 = vector.multi_reduction <add>, %59, %cst_29 [1] : vector<8x16xf32> to vector<8xf32>
    %61 = vector.shape_cast %60 : vector<8xf32> to vector<8x1xf32>
    %62 = math.log %61 : vector<8x1xf32>
    %63 = arith.addf %62, %56 : vector<8x1xf32>
    %64 = tpu.iota {dimensions = array<i32: 1>} : vector<8x16xi32>
    %65 = vector.broadcast %54 : vector<8x1xi32> to vector<8x16xi32>
    %66 = arith.cmpi eq, %64, %65 : vector<8x16xi32>
    %cst_30 = arith.constant 0.000000e+00 : f32
    %67 = vector.broadcast %cst_30 : f32 to vector<8x16xf32>
    %68 = arith.select %66, %14, %67 : vector<8x16xi1>, vector<8x16xf32>
    %cst_31 = arith.constant dense<0.000000e+00> : vector<8xf32>
    %69 = vector.multi_reduction <add>, %68, %cst_31 [1] : vector<8x16xf32> to vector<8xf32>
    %70 = vector.shape_cast %69 : vector<8xf32> to vector<8x1xf32>
    %71 = arith.subf %63, %70 : vector<8x1xf32>
    %cst_32 = arith.constant 0.000000e+00 : f32
    %72 = vector.broadcast %cst_32 : f32 to vector<8x1xf32>
    %73 = arith.select %29, %71, %72 : vector<8x1xi1>, vector<8x1xf32>
    %74 = vector.shape_cast %73 : vector<8x1xf32> to vector<1x8x1xf32>
    %cst_33 = arith.constant dense<0.000000e+00> : vector<1xf32>
    %75 = vector.multi_reduction <add>, %74, %cst_33 [1, 2] : vector<1x8x1xf32> to vector<1xf32>
    %76 = vector.shape_cast %75 : vector<1xf32> to vector<1x1x1xf32>
    %77 = vector.extract %76[0, 0, 0] : f32 from vector<1x1x1xf32>
    %c0_34 = arith.constant 0 : index
    %c2 = arith.constant 2 : index
    %78 = vector.load %arg7[%c0_34, %c2] : memref<8x3xi32, #tpu.memory_space<vmem>>, vector<8x1xi32>
    %cst_35 = arith.constant dense<0xFF800000> : vector<8xf32>
    %79 = vector.multi_reduction <maximumf>, %20, %cst_35 [1] : vector<8x5xf32> to vector<8xf32>
    %80 = vector.shape_cast %79 : vector<8xf32> to vector<8x1xf32>
    %81 = vector.broadcast %80 : vector<8x1xf32> to vector<8x5xf32>
    %82 = arith.subf %20, %81 : vector<8x5xf32>
    %83 = math.exp %82 : vector<8x5xf32>
    %cst_36 = arith.constant dense<0.000000e+00> : vector<8xf32>
    %84 = vector.multi_reduction <add>, %83, %cst_36 [1] : vector<8x5xf32> to vector<8xf32>
    %85 = vector.shape_cast %84 : vector<8xf32> to vector<8x1xf32>
    %86 = math.log %85 : vector<8x1xf32>
    %87 = arith.addf %86, %80 : vector<8x1xf32>
    %88 = tpu.iota {dimensions = array<i32: 1>} : vector<8x5xi32>
    %89 = vector.broadcast %78 : vector<8x1xi32> to vector<8x5xi32>
    %90 = arith.cmpi eq, %88, %89 : vector<8x5xi32>
    %cst_37 = arith.constant 0.000000e+00 : f32
    %91 = vector.broadcast %cst_37 : f32 to vector<8x5xf32>
    %92 = arith.select %90, %20, %91 : vector<8x5xi1>, vector<8x5xf32>
    %cst_38 = arith.constant dense<0.000000e+00> : vector<8xf32>
    %93 = vector.multi_reduction <add>, %92, %cst_38 [1] : vector<8x5xf32> to vector<8xf32>
    %94 = vector.shape_cast %93 : vector<8xf32> to vector<8x1xf32>
    %95 = arith.subf %87, %94 : vector<8x1xf32>
    %cst_39 = arith.constant 0.000000e+00 : f32
    %96 = vector.broadcast %cst_39 : f32 to vector<8x1xf32>
    %97 = arith.select %29, %95, %96 : vector<8x1xi1>, vector<8x1xf32>
    %98 = vector.shape_cast %97 : vector<8x1xf32> to vector<1x8x1xf32>
    %cst_40 = arith.constant dense<0.000000e+00> : vector<1xf32>
    %99 = vector.multi_reduction <add>, %98, %cst_40 [1, 2] : vector<1x8x1xf32> to vector<1xf32>
    %100 = vector.shape_cast %99 : vector<1xf32> to vector<1x1x1xf32>
    %101 = vector.extract %100[0, 0, 0] : f32 from vector<1x1x1xf32>
    %102 = tpu.iota {dimensions = array<i32: 2>} : vector<1x1x128xi32>
    %c0_i32 = arith.constant 0 : i32
    %103 = vector.broadcast %c0_i32 : i32 to vector<1x1x128xi32>
    %104 = arith.cmpi eq, %102, %103 : vector<1x1x128xi32>
    %c1_i32 = arith.constant 1 : i32
    %105 = vector.broadcast %c1_i32 : i32 to vector<1x1x128xi32>
    %106 = arith.cmpi eq, %102, %105 : vector<1x1x128xi32>
    %c2_i32 = arith.constant 2 : i32
    %107 = vector.broadcast %c2_i32 : i32 to vector<1x1x128xi32>
    %108 = arith.cmpi eq, %102, %107 : vector<1x1x128xi32>
    %cst_41 = arith.constant 0.000000e+00 : f32
    %109 = vector.broadcast %101 : f32 to vector<1x1x128xf32>
    %110 = vector.broadcast %cst_41 : f32 to vector<1x1x128xf32>
    %111 = arith.select %108, %109, %110 : vector<1x1x128xi1>, vector<1x1x128xf32>
    %112 = vector.broadcast %77 : f32 to vector<1x1x128xf32>
    %113 = arith.select %106, %112, %111 : vector<1x1x128xi1>, vector<1x1x128xf32>
    %114 = vector.broadcast %53 : f32 to vector<1x1x128xf32>
    %115 = arith.select %104, %114, %113 : vector<1x1x128xi1>, vector<1x1x128xf32>
    %c0_42 = arith.constant 0 : index
    %c0_43 = arith.constant 0 : index
    %c0_44 = arith.constant 0 : index
    %116 = vector.load %arg11[%c0_42, %c0_43, %c0_44] : memref<1x1x128xf32, #tpu.memory_space<vmem>>, vector<1x1x128xf32>
    tpu.vector_store %arg11[%c0_42, %c0_43, %c0_44], %115 {strides = array<i32>} : memref<1x1x128xf32, #tpu.memory_space<vmem>>, vector<1x1x128xf32>,
    return
  }
  func.func @transform_0(%arg0: i32) -> (i32, i32, i32) {
    %c0_i32 = arith.constant 0 : i32
    %c0_i32_0 = arith.constant 0 : i32
    %c0_i32_1 = arith.constant 0 : i32
    return %arg0, %c0_i32, %c0_i32_0 : i32, i32, i32
  }
  func.func @transform_1(%arg0: i32) -> (i32, i32) {
    %c0_i32 = arith.constant 0 : i32
    %c0_i32_0 = arith.constant 0 : i32
    return %arg0, %c0_i32 : i32, i32
  }
  func.func @transform_2(%arg0: i32) -> (i32, i32) {
    %c0_i32 = arith.constant 0 : i32
    %c0_i32_0 = arith.constant 0 : i32
    %c0_i32_1 = arith.constant 0 : i32
    return %c0_i32, %c0_i32_0 : i32, i32
  }
  func.func @transform_3(%arg0: i32) -> (i32, i32) {
    %c0_i32 = arith.constant 0 : i32
    %c0_i32_0 = arith.constant 0 : i32
    %c0_i32_1 = arith.constant 0 : i32
    return %c0_i32, %c0_i32_0 : i32, i32
  }
  func.func @transform_4(%arg0: i32) -> i32 {
    %c0_i32 = arith.constant 0 : i32
    %c0_i32_0 = arith.constant 0 : i32
    return %c0_i32 : i32
  }
  func.func @transform_5(%arg0: i32) -> (i32, i32) {
    %c0_i32 = arith.constant 0 : i32
    %c0_i32_0 = arith.constant 0 : i32
    %c0_i32_1 = arith.constant 0 : i32
    return %c0_i32, %c0_i32_0 : i32, i32
  }
  func.func @transform_6(%arg0: i32) -> (i32, i32) {
    %c0_i32 = arith.constant 0 : i32
    %c0_i32_0 = arith.constant 0 : i32
    return %arg0, %c0_i32 : i32, i32
  }
  func.func @transform_7(%arg0: i32) -> (i32, i32) {
    %c0_i32 = arith.constant 0 : i32
    %c0_i32_0 = arith.constant 0 : i32
    return %arg0, %c0_i32 : i32, i32
  }
  func.func @transform_8(%arg0: i32) -> (i32, i32) {
    %c0_i32 = arith.constant 0 : i32
    %c0_i32_0 = arith.constant 0 : i32
    return %arg0, %c0_i32 : i32, i32
  }
  func.func @transform_9(%arg0: i32) -> (i32, i32) {
    %c0_i32 = arith.constant 0 : i32
    %c0_i32_0 = arith.constant 0 : i32
    return %arg0, %c0_i32 : i32, i32
  }
  func.func @transform_10(%arg0: i32) -> (i32, i32, i32) {
    %c0_i32 = arith.constant 0 : i32
    %c0_i32_0 = arith.constant 0 : i32
    %c0_i32_1 = arith.constant 0 : i32
    return %arg0, %c0_i32, %c0_i32_0 : i32, i32, i32
  }
}

</mosaic_0001>

<llo_original>
// kernel: tpu_custom_call.1
$region0: #{tpu_custom_call.1}
  #allocation0 [shape = 'u32[]', space=smem, size = 0x4, offset = 0x4, fixed_abs, tag = 'smem constant byte address 0x4 - core index']
  #allocation1 [shape = 'u32[72,128]{1,0:T(1,128)}', space=vmem, size = 0x9000, scoped, tag = 'internal scratch']
  %s0 = inlined_call_operand.hbm [shape: bf16[16,16,32], index: 0, kind: input, shape index: {}]
  %s1 = inlined_call_operand.vmem [shape: bf16[16,32], index: 1, kind: input, shape index: {}]
  %s2 = inlined_call_operand.vmem [shape: bf16[32,2], index: 2, kind: input, shape index: {}]
  %s3 = inlined_call_operand.vmem [shape: bf16[32,5], index: 3, kind: input, shape index: {}]
  %s4 = inlined_call_operand.vmem [shape: f32[2], index: 4, kind: input, shape index: {}]
  %s5 = inlined_call_operand.vmem [shape: f32[1,5], index: 5, kind: input, shape index: {}]
  %s6 = inlined_call_operand.vmem [shape: s32[16,3], index: 6, kind: input, shape index: {}]
  %s7 = inlined_call_operand.hbm [shape: f32[16,16], index: 7, kind: output, shape index: {0}]
  %s8 = inlined_call_operand.hbm [shape: f32[16,16], index: 8, kind: output, shape index: {1}]
  %s9 = inlined_call_operand.vmem [shape: f32[16,5], index: 9, kind: output, shape index: {2}]
  %s10 = inlined_call_operand.hbm [shape: f32[2,1,128], index: 10, kind: output, shape index: {3}]
  %11 = xla_tuple %s7, %s8, %s9, %s10
  %s12 = sld [smem:[#allocation0]]
  $region93: #{tpu_custom_call.1} parent=0
    _
  %s14 = ssub.s32 1, %s12
  %s15 = scalar_select 0, %s14, %s12
  $region1: #{tpu_custom_call.1} parent=0
    #allocation2 [shape = 'u8[65536]{0}', space=vmem, size = 0x10000, scoped, tag = 'input window, operand 0']
    #allocation3 [shape = 's32[2]{0}', space=sflag, size = 0x8, scoped, tag = 'scoped memory for tpu_custom_call.1']
    #allocation4 [shape = 's32[2]{0}', space=sflag, size = 0x8, scoped, tag = 'scoped memory for tpu_custom_call.1']
    #allocation5 [shape = 's32[2]{0}', space=sflag, size = 0x8, scoped, tag = 'scoped memory for tpu_custom_call.1']
    #allocation6 [shape = 'u8[512]{0}', space=smem, size = 0x200, scoped, tag = 'input window, operand 4, single buffered']
    #allocation7 [shape = 'u8[8192]{0}', space=vmem, size = 0x2000, scoped, tag = 'output window, operand 0']
    #allocation8 [shape = 'u8[8192]{0}', space=vmem, size = 0x2000, scoped, tag = 'output window, operand 1']
    #allocation9 [shape = 's32[2]{0}', space=sflag, size = 0x8, scoped, tag = 'scoped memory for tpu_custom_call.1']
    #allocation10 [shape = 'u8[1024]{0}', space=vmem, size = 0x400, scoped, tag = 'output window, operand 3']
    %16 = vsyncpa [#allocation3], 0
    %s17 = scalar_lea.sflag [#allocation3], 1
    %18 = vsyncpa %s17, 0
    %19 = vsyncpa [#allocation5], 0
    %20 = vsyncpa [#allocation4], 0
    %s21 = scalar_lea.sflag [#allocation4], 1
    %22 = vsyncpa %s21, 0
    %23 = vsyncpa [#allocation9], 0
    %s24 = scalar_lea.sflag [#allocation9], 1
    %25 = vsyncpa %s24, 0
    loop: start=0, step=1, limit=4
    $region2: #{tpu_custom_call.1} parent=1 // loop_pre_header
      _
    $region3: #{tpu_custom_call.1} parent=1 // loop_header
      %s27 = sphi 0, %s31
      %p28 = scmp.ge.s32.totalorder %s27, 4
      %s37 = sphi 0, %s39
      %s40 = sphi 0, %s37
      %s41 = sphi 0, %s40
      %s57 = sphi 0, %s41
      %s63 = sphi 0, %s65
      %s66 = sphi 0, %s63
      %s67 = sphi 0, %s66
      %s83 = sphi 0, %s67
      %s87 = sphi 0, %s87
      %s89 = sphi 0, %s87
      %s90 = sphi 0, %s89
      %s104 = sphi 0, %s90
      %s108 = sphi 0, %s108
      %s110 = sphi 0, %s108
      %s111 = sphi 0, %s110
      %s125 = sphi 0, %s111
      %s129 = sphi 0, %s129
      %s131 = sphi 0, %s129
      %s132 = sphi 0, %s131
      %s146 = sphi 0, %s132
      %s150 = sphi 0, %s150
      %s152 = sphi 0, %s150
      %s153 = sphi 0, %s152
      %s167 = sphi 0, %s153
      %s173 = sphi 0, %s175
      %s176 = sphi 0, %s173
      %s177 = sphi 0, %s176
      %s193 = sphi 0, %s177
      %s199 = sphi 0, %s201
      %s202 = sphi 0, %s199
      %s203 = sphi 0, %s202
      %s219 = sphi 0, %s203
      %s225 = sphi 0, %s227
      %s228 = sphi 0, %s225
      %s229 = sphi 0, %s228
      %s245 = sphi 0, %s229
      %s251 = sphi 0, %s253
      %s254 = sphi 0, %s251
      %s255 = sphi 0, %s254
      %s271 = sphi 0, %s255
      %s277 = sphi 0, %s279
      %s280 = sphi 0, %s277
      %s281 = sphi 0, %s280
      %s297 = sphi 0, %s281
    $region4: #{tpu_custom_call.1} parent=1 // loop_header_branch
      %30 = sbr.rel (%p28) target = $region8
    $region5: #{tpu_custom_call.1} parent=1 // loop_body
      %s32 = ssub.s32 %s27, 1
      %s33 = ssub.s32 %s27, 2
      %s34 = sadd.s32 %s27, 1
      %s35 = ssub.s32 %s27, %s34
      %p36 = scmp.eq.s32.totalorder %s35, 0
      %s38 = sadd.s32 %s37, 1
      %s39 = scalar_select %p36, %s37, %s38
      %p42 = pneg %p36
      %p43 = scmp.eq.s32.totalorder %s27, 1
      %p44 = por %p42, %p43
      %p45 = scmp.ne.s32.totalorder %s37, %s40
      %p46 = scmp.eq.s32.totalorder %s27, 0
      %p47 = por %p45, %p46
      %p48 = scmp.ne.s32.totalorder %s37, %s40
      %p49 = scmp.eq.s32.totalorder %s32, 1
      %p50 = por %p48, %p49
      %p51 = scmp.ne.s32.totalorder %s40, %s41
      %p52 = scmp.eq.s32.totalorder %s32, 0
      %p53 = por %p51, %p52
      %p54 = scmp.ne.s32.totalorder %s40, %s41
      %p55 = scmp.eq.s32.totalorder %s33, 1
      %p56 = por %p54, %p55
      %p58 = scmp.ne.s32.totalorder %s41, %s57
      %p59 = scmp.eq.s32.totalorder %s33, 0
      %p60 = por %p58, %p59
      %s61 = ssub.s32 %s27, %s34
      %p62 = scmp.eq.s32.totalorder %s61, 0
      %s64 = sadd.s32 %s63, 1
      %s65 = scalar_select %p62, %s63, %s64
      %p68 = pneg %p62
      %p69 = scmp.eq.s32.totalorder %s27, 1
      %p70 = por %p68, %p69
      %p71 = scmp.ne.s32.totalorder %s63, %s66
      %p72 = scmp.eq.s32.totalorder %s27, 0
      %p73 = por %p71, %p72
      %p74 = scmp.ne.s32.totalorder %s63, %s66
      %p75 = scmp.eq.s32.totalorder %s32, 1
      %p76 = por %p74, %p75
      %p77 = scmp.ne.s32.totalorder %s66, %s67
      %p78 = scmp.eq.s32.totalorder %s32, 0
      %p79 = por %p77, %p78
      %p80 = scmp.ne.s32.totalorder %s66, %s67
      %p81 = scmp.eq.s32.totalorder %s33, 1
      %p82 = por %p80, %p81
      %p84 = scmp.ne.s32.totalorder %s67, %s83
      %p85 = scmp.eq.s32.totalorder %s33, 0
      %p86 = por %p84, %p85
      %s88 = sadd.s32 %s87, 1
      %p91 = scmp.eq.s32.totalorder %s27, 1
      %p92 = scmp.ne.s32.totalorder %s87, %s89
      %p93 = scmp.eq.s32.totalorder %s27, 0
      %p94 = por %p92, %p93
      %p95 = scmp.ne.s32.totalorder %s87, %s89
      %p96 = scmp.eq.s32.totalorder %s32, 1
      %p97 = por %p95, %p96
      %p98 = scmp.ne.s32.totalorder %s89, %s90
      %p99 = scmp.eq.s32.totalorder %s32, 0
      %p100 = por %p98, %p99
      %p101 = scmp.ne.s32.totalorder %s89, %s90
      %p102 = scmp.eq.s32.totalorder %s33, 1
      %p103 = por %p101, %p102
      %p105 = scmp.ne.s32.totalorder %s90, %s104
      %p106 = scmp.eq.s32.totalorder %s33, 0
      %p107 = por %p105, %p106
      %s109 = sadd.s32 %s108, 1
      %p112 = scmp.eq.s32.totalorder %s27, 1
      %p113 = scmp.ne.s32.totalorder %s108, %s110
      %p114 = scmp.eq.s32.totalorder %s27, 0
      %p115 = por %p113, %p114
      %p116 = scmp.ne.s32.totalorder %s108, %s110
      %p117 = scmp.eq.s32.totalorder %s32, 1
      %p118 = por %p116, %p117
      %p119 = scmp.ne.s32.totalorder %s110, %s111
      %p120 = scmp.eq.s32.totalorder %s32, 0
      %p121 = por %p119, %p120
      %p122 = scmp.ne.s32.totalorder %s110, %s111
      %p123 = scmp.eq.s32.totalorder %s33, 1
      %p124 = por %p122, %p123
      %p126 = scmp.ne.s32.totalorder %s111, %s125
      %p127 = scmp.eq.s32.totalorder %s33, 0
      %p128 = por %p126, %p127
      %s130 = sadd.s32 %s129, 1
      %p133 = scmp.eq.s32.totalorder %s27, 1
      %p134 = scmp.ne.s32.totalorder %s129, %s131
      %p135 = scmp.eq.s32.totalorder %s27, 0
      %p136 = por %p134, %p135
      %p137 = scmp.ne.s32.totalorder %s129, %s131
      %p138 = scmp.eq.s32.totalorder %s32, 1
      %p139 = por %p137, %p138
      %p140 = scmp.ne.s32.totalorder %s131, %s132
      %p141 = scmp.eq.s32.totalorder %s32, 0
      %p142 = por %p140, %p141
      %p143 = scmp.ne.s32.totalorder %s131, %s132
      %p144 = scmp.eq.s32.totalorder %s33, 1
      %p145 = por %p143, %p144
      %p147 = scmp.ne.s32.totalorder %s132, %s146
      %p148 = scmp.eq.s32.totalorder %s33, 0
      %p149 = por %p147, %p148
      %s151 = sadd.s32 %s150, 1
      %p154 = scmp.eq.s32.totalorder %s27, 1
      %p155 = scmp.ne.s32.totalorder %s150, %s152
      %p156 = scmp.eq.s32.totalorder %s27, 0
      %p157 = por %p155, %p156
      %p158 = scmp.ne.s32.totalorder %s150, %s152
      %p159 = scmp.eq.s32.totalorder %s32, 1
      %p160 = por %p158, %p159
      %p161 = scmp.ne.s32.totalorder %s152, %s153
      %p162 = scmp.eq.s32.totalorder %s32, 0
      %p163 = por %p161, %p162
      %p164 = scmp.ne.s32.totalorder %s152, %s153
      %p165 = scmp.eq.s32.totalorder %s33, 1
      %p166 = por %p164, %p165
      %p168 = scmp.ne.s32.totalorder %s153, %s167
      %p169 = scmp.eq.s32.totalorder %s33, 0
      %p170 = por %p168, %p169
      %s171 = ssub.s32 %s27, %s34
      %p172 = scmp.eq.s32.totalorder %s171, 0
      %s174 = sadd.s32 %s173, 1
      %s175 = scalar_select %p172, %s173, %s174
      %p178 = pneg %p172
      %p179 = scmp.eq.s32.totalorder %s27, 1
      %p180 = por %p178, %p179
      %p181 = scmp.ne.s32.totalorder %s173, %s176
      %p182 = scmp.eq.s32.totalorder %s27, 0
      %p183 = por %p181, %p182
      %p184 = scmp.ne.s32.totalorder %s173, %s176
      %p185 = scmp.eq.s32.totalorder %s32, 1
      %p186 = por %p184, %p185
      %p187 = scmp.ne.s32.totalorder %s176, %s177
      %p188 = scmp.eq.s32.totalorder %s32, 0
      %p189 = por %p187, %p188
      %p190 = scmp.ne.s32.totalorder %s176, %s177
      %p191 = scmp.eq.s32.totalorder %s33, 1
      %p192 = por %p190, %p191
      %p194 = scmp.ne.s32.totalorder %s177, %s193
      %p195 = scmp.eq.s32.totalorder %s33, 0
      %p196 = por %p194, %p195
      %s197 = ssub.s32 %s27, %s34
      %p198 = scmp.eq.s32.totalorder %s197, 0
      %s200 = sadd.s32 %s199, 1
      %s201 = scalar_select %p198, %s199, %s200
      %p204 = pneg %p198
      %p205 = scmp.eq.s32.totalorder %s27, 1
      %p206 = por %p204, %p205
      %p207 = scmp.ne.s32.totalorder %s199, %s202
      %p208 = scmp.eq.s32.totalorder %s27, 0
      %p209 = por %p207, %p208
      %p210 = scmp.ne.s32.totalorder %s199, %s202
      %p211 = scmp.eq.s32.totalorder %s32, 1
      %p212 = por %p210, %p211
      %p213 = scmp.ne.s32.totalorder %s202, %s203
      %p214 = scmp.eq.s32.totalorder %s32, 0
      %p215 = por %p213, %p214
      %p216 = scmp.ne.s32.totalorder %s202, %s203
      %p217 = scmp.eq.s32.totalorder %s33, 1
      %p218 = por %p216, %p217
      %p220 = scmp.ne.s32.totalorder %s203, %s219
      %p221 = scmp.eq.s32.totalorder %s33, 0
      %p222 = por %p220, %p221
      %s223 = ssub.s32 %s27, %s34
      %p224 = scmp.eq.s32.totalorder %s223, 0
      %s226 = sadd.s32 %s225, 1
      %s227 = scalar_select %p224, %s225, %s226
      %p230 = pneg %p224
      %p231 = scmp.eq.s32.totalorder %s27, 1
      %p232 = por %p230, %p231
      %p233 = scmp.ne.s32.totalorder %s225, %s228
      %p234 = scmp.eq.s32.totalorder %s27, 0
      %p235 = por %p233, %p234
      %p236 = scmp.ne.s32.totalorder %s225, %s228
      %p237 = scmp.eq.s32.totalorder %s32, 1
      %p238 = por %p236, %p237
      %p239 = scmp.ne.s32.totalorder %s228, %s229
      %p240 = scmp.eq.s32.totalorder %s32, 0
      %p241 = por %p239, %p240
      %p242 = scmp.ne.s32.totalorder %s228, %s229
      %p243 = scmp.eq.s32.totalorder %s33, 1
      %p244 = por %p242, %p243
      %p246 = scmp.ne.s32.totalorder %s229, %s245
      %p247 = scmp.eq.s32.totalorder %s33, 0
      %p248 = por %p246, %p247
      %s249 = ssub.s32 %s27, %s34
      %p250 = scmp.eq.s32.totalorder %s249, 0
      %s252 = sadd.s32 %s251, 1
      %s253 = scalar_select %p250, %s251, %s252
      %p256 = pneg %p250
      %p257 = scmp.eq.s32.totalorder %s27, 1
      %p258 = por %p256, %p257
      %p259 = scmp.ne.s32.totalorder %s251, %s254
      %p260 = scmp.eq.s32.totalorder %s27, 0
      %p261 = por %p259, %p260
      %p262 = scmp.ne.s32.totalorder %s251, %s254
      %p263 = scmp.eq.s32.totalorder %s32, 1
      %p264 = por %p262, %p263
      %p265 = scmp.ne.s32.totalorder %s254, %s255
      %p266 = scmp.eq.s32.totalorder %s32, 0
      %p267 = por %p265, %p266
      %p268 = scmp.ne.s32.totalorder %s254, %s255
      %p269 = scmp.eq.s32.totalorder %s33, 1
      %p270 = por %p268, %p269
      %p272 = scmp.ne.s32.totalorder %s255, %s271
      %p273 = scmp.eq.s32.totalorder %s33, 0
      %p274 = por %p272, %p273
      %s275 = ssub.s32 %s27, %s34
      %p276 = scmp.eq.s32.totalorder %s275, 0
      %s278 = sadd.s32 %s277, 1
      %s279 = scalar_select %p276, %s277, %s278
      %p282 = pneg %p276
      %p283 = scmp.eq.s32.totalorder %s27, 1
      %p284 = por %p282, %p283
      %p285 = scmp.ne.s32.totalorder %s277, %s280
      %p286 = scmp.eq.s32.totalorder %s27, 0
      %p287 = por %p285, %p286
      %p288 = scmp.ne.s32.totalorder %s277, %s280
      %p289 = scmp.eq.s32.totalorder %s32, 1
      %p290 = por %p288, %p289
      %p291 = scmp.ne.s32.totalorder %s280, %s281
      %p292 = scmp.eq.s32.totalorder %s32, 0
      %p293 = por %p291, %p292
      %p294 = scmp.ne.s32.totalorder %s280, %s281
      %p295 = scmp.eq.s32.totalorder %s33, 1
      %p296 = por %p294, %p295
      %p298 = scmp.ne.s32.totalorder %s281, %s297
      %p299 = scmp.eq.s32.totalorder %s33, 0
      %p300 = por %p298, %p299
      %p301 = scmp.le.s32.totalorder 1, %s27
      %p302 = scmp.lt.s32.totalorder %s27, 3
      %p303 = pnand %p301, %p302
      %p304 = pneg %p303
      // Predicated region
      $region9: #{tpu_custom_call.1} parent=5 // pred_check
        _
      $region10: #{tpu_custom_call.1} parent=5 // pred_check_branch
        %306 = sbr.rel (%p303) target = $region12
      $region11: #{tpu_custom_call.1} parent=5 // pred_region
        %s307 = ssub.s32 %s27, 1
        // Predicated region
        $region13: #{tpu_custom_call.1} parent=11 // pred_check
          %p308 = pneg %p100
        $region14: #{tpu_custom_call.1} parent=11 // pred_check_branch
          %310 = sbr.rel (%p308) target = $region16
        $region15: #{tpu_custom_call.1} parent=11 // pred_region
          _
        $region16: #{tpu_custom_call.1} parent=11 // pred_fallthru
          _
        // Predicated region
        $region17: #{tpu_custom_call.1} parent=11 // pred_check
          %p311 = pneg %p121
        $region18: #{tpu_custom_call.1} parent=11 // pred_check_branch
          %313 = sbr.rel (%p311) target = $region20
        $region19: #{tpu_custom_call.1} parent=11 // pred_region
          _
        $region20: #{tpu_custom_call.1} parent=11 // pred_fallthru
          _
        // Predicated region
        $region21: #{tpu_custom_call.1} parent=11 // pred_check
          %p314 = pneg %p142
        $region22: #{tpu_custom_call.1} parent=11 // pred_check_branch
          %316 = sbr.rel (%p314) target = $region24
        $region23: #{tpu_custom_call.1} parent=11 // pred_region
          %318 = vsyncadd [#allocation5], 0
          %s320 = sshll.u32 %s4, 4
          %s321 = int_to_ptr.vmem [resolvable:$true] %s320
          %323 = dma.vmem_to_smem %s321, 16, [#allocation6], [#allocation5]
        $region24: #{tpu_custom_call.1} parent=11 // pred_fallthru
          _
        // Predicated region
        $region25: #{tpu_custom_call.1} parent=11 // pred_check
          %p324 = pneg %p163
        $region26: #{tpu_custom_call.1} parent=11 // pred_check_branch
          %326 = sbr.rel (%p324) target = $region28
        $region27: #{tpu_custom_call.1} parent=11 // pred_region
          _
        $region28: #{tpu_custom_call.1} parent=11 // pred_fallthru
          _
      $region12: #{tpu_custom_call.1} parent=5 // pred_fallthru
        _
      %p327 = scmp.lt.s32.totalorder %s27, 2
      // Predicated region
      $region29: #{tpu_custom_call.1} parent=5 // pred_check
        %p328 = pneg %p327
      $region30: #{tpu_custom_call.1} parent=5 // pred_check_branch
        %330 = sbr.rel (%p328) target = $region32
      $region31: #{tpu_custom_call.1} parent=5 // pred_region
        // Predicated region
        $region33: #{tpu_custom_call.1} parent=31 // pred_check
          %p331 = pneg %p47
        $region34: #{tpu_custom_call.1} parent=31 // pred_check_branch
          %333 = sbr.rel (%p331) target = $region36
        $region35: #{tpu_custom_call.1} parent=31 // pred_region
          %s334 = sand.u32 %s37, 1
          %s335 = scalar_lea.sflag [#allocation3], %s334
          %s336 = sand.u32 %s37, 1
          %s337 = smul.addr %s336, 64
          %s338 = scalar_lea.vmem [#allocation2], %s337
          %s339 = smul.u32 8, %s27
          %341 = vsyncadd %s335, 0
          %s342 = smul.addr %s339, 2
          %s343 = smul.addr %s342, 4
          %s344 = scalar_lea.hbm %s0, %s343
          %s345 = sshll.u32 %s344, 4
          %s346 = int_to_ptr.hbm [resolvable:$true] %s345
          %s347 = sshll.u32 %s338, 4
          %s348 = int_to_ptr.vmem [resolvable:$true] %s347
          %353 = dma.hbm_to_vmem [thread:$0]  %s346, 1024, %s348, %s335, 64, 64, 4
        $region36: #{tpu_custom_call.1} parent=31 // pred_fallthru
          _
        // Predicated region
        $region37: #{tpu_custom_call.1} parent=31 // pred_check
          %p354 = pneg %p73
        $region38: #{tpu_custom_call.1} parent=31 // pred_check_branch
          %356 = sbr.rel (%p354) target = $region40
        $region39: #{tpu_custom_call.1} parent=31 // pred_region
          %p357 = scmp.lt.s32.totalorder %s27, 1
          %s358 = scalar_select %p357, %s27, 1
          %s359 = smul.addr %s358, 4
          %s360 = scalar_lea.vmem %s1, %s359
        $region40: #{tpu_custom_call.1} parent=31 // pred_fallthru
          _
        // Predicated region
        $region41: #{tpu_custom_call.1} parent=31 // pred_check
          %p361 = pneg %p183
        $region42: #{tpu_custom_call.1} parent=31 // pred_check_branch
          %363 = sbr.rel (%p361) target = $region44
        $region43: #{tpu_custom_call.1} parent=31 // pred_region
          %p364 = scmp.lt.s32.totalorder %s27, 1
          %s365 = scalar_select %p364, %s27, 1
          %s366 = smul.addr %s365, 8
          %s367 = scalar_lea.vmem %s6, %s366
        $region44: #{tpu_custom_call.1} parent=31 // pred_fallthru
          _
      $region32: #{tpu_custom_call.1} parent=5 // pred_fallthru
        _
      %p368 = scmp.le.s32.totalorder 1, %s27
      %p369 = scmp.lt.s32.totalorder %s27, 3
      %p370 = pnand %p368, %p369
      %p371 = pneg %p370
      // Predicated region
      $region45: #{tpu_custom_call.1} parent=5 // pred_check
        _
      $region46: #{tpu_custom_call.1} parent=5 // pred_check_branch
        %373 = sbr.rel (%p370) target = $region48
      $region47: #{tpu_custom_call.1} parent=5 // pred_region
        %s374 = ssub.s32 %s27, 1
        %s375 = sand.u32 %s40, 1
        %s376 = scalar_lea.sflag [#allocation3], %s375
        %s377 = sand.u32 %s40, 1
        %s378 = smul.addr %s377, 64
        %s379 = scalar_lea.vmem [#allocation2], %s378
        // Predicated region
        $region49: #{tpu_custom_call.1} parent=47 // pred_check
          %p380 = pneg %p53
        $region50: #{tpu_custom_call.1} parent=47 // pred_check_branch
          %382 = sbr.rel (%p380) target = $region52
        $region51: #{tpu_custom_call.1} parent=47 // pred_region
          %384 = dma.done %s376, 1024
        $region52: #{tpu_custom_call.1} parent=47 // pred_fallthru
          _
        // Predicated region
        $region53: #{tpu_custom_call.1} parent=47 // pred_check
          %p385 = pneg %p142
        $region54: #{tpu_custom_call.1} parent=47 // pred_check_branch
          %387 = sbr.rel (%p385) target = $region56
        $region55: #{tpu_custom_call.1} parent=47 // pred_region
          %389 = dma.done [#allocation5], 16
        $region56: #{tpu_custom_call.1} parent=47 // pred_fallthru
          _
        %390 = sfence
        %s391 = sand.u32 %s40, 1
        %s392 = scalar_lea.sflag [#allocation3], %s391
        %s393 = sand.u32 %s40, 1
        %s394 = smul.addr %s393, 64
        %s395 = scalar_lea.vmem [#allocation2], %s394
        %p396 = pneg %p53
        %p397 = pneg %p50
        %p398 = scmp.lt.s32.totalorder %s32, 1
        %s399 = scalar_select %p398, %s32, 1
        %s400 = smul.addr %s399, 4
        %s401 = scalar_lea.vmem %s1, %s400
        %p402 = pneg %p79
        %p403 = pneg %p76
        %p404 = pneg %p100
        %p405 = pneg %p97
        %p406 = pneg %p121
        %p407 = pneg %p118
        %p408 = pneg %p142
        %p409 = pneg %p139
        %p410 = pneg %p163
        %p411 = pneg %p160
        %p412 = scmp.lt.s32.totalorder %s32, 1
        %s413 = scalar_select %p412, %s32, 1
        %s414 = smul.addr %s413, 8
        %s415 = scalar_lea.vmem %s6, %s414
        %p416 = pneg %p189
        %p417 = pneg %p186
        %p418 = pneg %p215
        %p419 = pneg %p212
        %s420 = sand.u32 %s202, 1
        %s421 = scalar_lea.sflag [#allocation4], %s420
        %s422 = sand.u32 %s202, 1
        %s423 = smul.addr %s422, 8
        %s424 = scalar_lea.vmem [#allocation7], %s423
        %p425 = pneg %p241
        %p426 = pneg %p238
        %s427 = sand.u32 %s32, 1
        %s428 = scalar_lea.sflag [#allocation9], %s427
        %s429 = sand.u32 %s228, 1
        %s430 = smul.addr %s429, 8
        %s431 = scalar_lea.vmem [#allocation8], %s430
        %p432 = pneg %p267
        %p433 = pneg %p264
        %p434 = scmp.lt.s32.totalorder %s32, 1
        %s435 = scalar_select %p434, %s32, 1
        %s436 = smul.addr %s435, 8
        %s437 = scalar_lea.vmem %s9, %s436
        %p438 = pneg %p293
        %p439 = pneg %p290
        %s440 = sand.u32 %s32, 1
        %s441 = scalar_lea.sflag [#allocation9], %s440
        %s442 = sand.u32 %s280, 1
        %s443 = scalar_lea.vmem [#allocation10], %s442
        %s444 = smul.u32 8, %s32
        %p445 = scmp.lt.s32.totalorder %s32, 1
        %s446 = scalar_select %p445, %s32, 1
        %s447 = smul.addr %s446, 4
        %s448 = scalar_lea.vmem %s1, %s447
        %p449 = scmp.lt.s32.totalorder %s32, 1
        %s450 = scalar_select %p449, %s32, 1
        %s451 = smul.addr %s450, 8
        %s452 = scalar_lea.vmem %s6, %s451
        %p453 = scmp.lt.s32.totalorder %s32, 1
        %s454 = scalar_select %p453, %s32, 1
        %s455 = smul.addr %s454, 8
        %s456 = scalar_lea.vmem %s9, %s455
        %v458 = vld [vmem:[%s379] sm:$0xf]
        %v459 = vld [vmem:[%s379 + $0x4] sm:$0xf]
        %v460 = vld [vmem:[%s379 + $0x8] sm:$0xf]
        %v461 = vld [vmem:[%s379 + $0xc] sm:$0xf]
        %v462 = vld [vmem:[%s379 + $0x10] sm:$0xf]
        %v463 = vld [vmem:[%s379 + $0x14] sm:$0xf]
        %v464 = vld [vmem:[%s379 + $0x18] sm:$0xf]
        %v465 = vld [vmem:[%s379 + $0x1c] sm:$0xf]
        %v466 = vld [vmem:[%s379 + $0x20] sm:$0xf]
        %v467 = vld [vmem:[%s379 + $0x24] sm:$0xf]
        %v468 = vld [vmem:[%s379 + $0x28] sm:$0xf]
        %v469 = vld [vmem:[%s379 + $0x2c] sm:$0xf]
        %v470 = vld [vmem:[%s379 + $0x30] sm:$0xf]
        %v471 = vld [vmem:[%s379 + $0x34] sm:$0xf]
        %v472 = vld [vmem:[%s379 + $0x38] sm:$0xf]
        %v473 = vld [vmem:[%s379 + $0x3c] sm:$0xf]
        %v474 = vld [vmem:[%s2] sm:$0xf]
        %v475 = vld [vmem:[%s2 + $0x4] sm:$0xf]
        %v476 = vld [vmem:[%s2 + $0x8] sm:$0xf]
        %v477 = vld [vmem:[%s2 + $0xc] sm:$0xf]
        %v494 = vunpack.c.l.b16 %v458
        %v495 = vunpack.c.l.b16 %v459
        %v496 = vunpack.c.l.b16 %v460
        %v497 = vunpack.c.l.b16 %v461
        %v498 = vunpack.c.l.b16 %v462
        %v499 = vunpack.c.l.b16 %v463
        %v500 = vunpack.c.l.b16 %v464
        %v501 = vunpack.c.l.b16 %v465
        %v502 = vunpack.c.l.b16 %v466
        %v503 = vunpack.c.l.b16 %v467
        %v504 = vunpack.c.l.b16 %v468
        %v505 = vunpack.c.l.b16 %v469
        %v506 = vunpack.c.l.b16 %v470
        %v507 = vunpack.c.l.b16 %v471
        %v508 = vunpack.c.l.b16 %v472
        %v509 = vunpack.c.l.b16 %v473
        %v510 = vpack.c.b16 %v495, %v494
        %v511 = vpack.c.b16 %v497, %v496
        %v512 = vpack.c.b16 %v499, %v498
        %v513 = vpack.c.b16 %v501, %v500
        %v514 = vpack.c.b16 %v503, %v502
        %v515 = vpack.c.b16 %v505, %v504
        %v516 = vpack.c.b16 %v507, %v506
        %v517 = vpack.c.b16 %v509, %v508
        %v522 = vunpack.c.l.b16 %v474
        %v523 = vunpack.c.l.b16 %v475
        %v524 = vunpack.c.l.b16 %v476
        %v525 = vunpack.c.l.b16 %v477
        %v526 = vpack.c.b16 %v523, %v522
        %v527 = vpack.c.b16 %v525, %v524
        %vm530 = vcmask 261120
        %v532 = vsel %vm530, %v510, 0
        %v535 = vsel %vm530, %v511, 0
        %v538 = vsel %vm530, %v512, 0
        %v541 = vsel %vm530, %v513, 0
        %v544 = vsel %vm530, %v514, 0
        %v547 = vsel %vm530, %v515, 0
        %v550 = vsel %vm530, %v516, 0
        %v553 = vsel %vm530, %v517, 0
        %555 = vmatpush.bf16.msra.mxu0 0
        %556 = vmatpush.bf16.msra.mxu0 0
        %557 = vmatpush.bf16.msra.mxu0 0
        %558 = vmatpush.bf16.msra.mxu0 0
        %559 = vmatpush.bf16.msra.mxu0 0
        %560 = vmatpush.bf16.msra.mxu0 0
        %561 = vmatpush.bf16.msra.mxu0 %v527
        %562 = vmatpush.bf16.msra.mxu0 %v526
        %563 = vmatmul.bf16.gmra.mxu0 %v532
        %v564 = vpop.f32.mrf.mxu0
        %v565 = vadd.f32 0.0, %v564
        %v566 = vpop.f32.mrf.mxu0
        %v567 = vadd.f32 0.0, %v566
        %568 = vmatmul.bf16.gmra.mxu0 %v535
        %v569 = vpop.f32.mrf.mxu0
        %v570 = vadd.f32 0.0, %v569
        %v571 = vpop.f32.mrf.mxu0
        %v572 = vadd.f32 0.0, %v571
        %573 = vmatmul.bf16.gmra.mxu0 %v538
        %v574 = vpop.f32.mrf.mxu0
        %v575 = vadd.f32 0.0, %v574
        %v576 = vpop.f32.mrf.mxu0
        %v577 = vadd.f32 0.0, %v576
        %578 = vmatmul.bf16.gmra.mxu0 %v541
        %v579 = vpop.f32.mrf.mxu0
        %v580 = vadd.f32 0.0, %v579
        %v581 = vpop.f32.mrf.mxu0
        %v582 = vadd.f32 0.0, %v581
        %583 = vmatmul.bf16.gmra.mxu0 %v544
        %v584 = vpop.f32.mrf.mxu0
        %v585 = vadd.f32 0.0, %v584
        %v586 = vpop.f32.mrf.mxu0
        %v587 = vadd.f32 0.0, %v586
        %588 = vmatmul.bf16.gmra.mxu0 %v547
        %v589 = vpop.f32.mrf.mxu0
        %v590 = vadd.f32 0.0, %v589
        %v591 = vpop.f32.mrf.mxu0
        %v592 = vadd.f32 0.0, %v591
        %593 = vmatmul.bf16.gmra.mxu0 %v550
        %v594 = vpop.f32.mrf.mxu0
        %v595 = vadd.f32 0.0, %v594
        %v596 = vpop.f32.mrf.mxu0
        %v597 = vadd.f32 0.0, %v596
        %598 = vmatmul.bf16.gmra.mxu0 %v553
        %v599 = vpop.f32.mrf.mxu0
        %v600 = vadd.f32 0.0, %v599
        %v601 = vpop.f32.mrf.mxu0
        %v602 = vadd.f32 0.0, %v601
        %603 = vdwg.mxu0
        %s604 = sld [smem:[#allocation6]]
        %v605 = vstv %s604
        %v606 = vadd.f32 %v565, %v605
        %v607 = vadd.f32 %v567, %v605
        %v608 = vadd.f32 %v570, %v605
        %v609 = vadd.f32 %v572, %v605
        %v610 = vadd.f32 %v575, %v605
        %v611 = vadd.f32 %v577, %v605
        %v612 = vadd.f32 %v580, %v605
        %v613 = vadd.f32 %v582, %v605
        %v614 = vadd.f32 %v585, %v605
        %v615 = vadd.f32 %v587, %v605
        %v616 = vadd.f32 %v590, %v605
        %v617 = vadd.f32 %v592, %v605
        %v618 = vadd.f32 %v595, %v605
        %v619 = vadd.f32 %v597, %v605
        %v620 = vadd.f32 %v600, %v605
        %v621 = vadd.f32 %v602, %v605
        %s622 = sld [smem:[#allocation6 + $0x1]]
        %v623 = vstv %s622
        %v624 = vadd.f32 %v565, %v623
        %v625 = vadd.f32 %v567, %v623
        %v626 = vadd.f32 %v570, %v623
        %v627 = vadd.f32 %v572, %v623
        %v628 = vadd.f32 %v575, %v623
        %v629 = vadd.f32 %v577, %v623
        %v630 = vadd.f32 %v580, %v623
        %v631 = vadd.f32 %v582, %v623
        %v632 = vadd.f32 %v585, %v623
        %v633 = vadd.f32 %v587, %v623
        %v634 = vadd.f32 %v590, %v623
        %v635 = vadd.f32 %v592, %v623
        %v636 = vadd.f32 %v595, %v623
        %v637 = vadd.f32 %v597, %v623
        %v638 = vadd.f32 %v600, %v623
        %v639 = vadd.f32 %v602, %v623
        %v640 = vld [vmem:[%s448] sm:$0xf]
        %v641 = vld [vmem:[%s3] sm:$0xf]
        %v642 = vld [vmem:[%s3 + $0x4] sm:$0xf]
        %v643 = vld [vmem:[%s3 + $0x8] sm:$0xf]
        %v644 = vld [vmem:[%s3 + $0xc] sm:$0xf]
        %v645 = vld [vmem:[%s5] sm:$0x1]
        %v647 = vperm.slane %v645, 0
        %v653 = vunpack.c.l.b16 %v641
        %v654 = vunpack.c.l.b16 %v642
        %v655 = vunpack.c.l.b16 %v643
        %v656 = vunpack.c.l.b16 %v644
        %v657 = vpack.c.b16 %v654, %v653
        %v658 = vpack.c.b16 %v656, %v655
        %v662 = vsel %vm530, %v640, 0
        %664 = vmatpush.bf16.msra.mxu0 0
        %665 = vmatpush.bf16.msra.mxu0 0
        %666 = vmatpush.bf16.msra.mxu0 0
        %667 = vmatpush.bf16.msra.mxu0 0
        %668 = vmatpush.bf16.msra.mxu0 0
        %669 = vmatpush.bf16.msra.mxu0 0
        %670 = vmatpush.bf16.msra.mxu0 %v658
        %671 = vmatpush.bf16.msra.mxu0 %v657
        %672 = vmatmul.bf16.gmra.mxu0 %v662
        %v673 = vpop.f32.mrf.mxu0
        %v674 = vadd.f32 %v647, %v673
        %v675 = vpop.f32.mrf.mxu0
        %676 = vdwg.mxu0
        %693 = vset.pattern.permute.xlu0 0
        %694 = vperm.xlu0 %693, %v606
        %v695 = vpop.permute.xlu0 %694
        %696 = vset.pattern.permute.xlu0 0
        %697 = vperm.xlu0 %696, %v607
        %v698 = vpop.permute.xlu0 %697
        %699 = vset.pattern.permute.xlu0 0
        %700 = vperm.xlu0 %699, %v608
        %v701 = vpop.permute.xlu0 %700
        %702 = vset.pattern.permute.xlu0 0
        %703 = vperm.xlu0 %702, %v609
        %v704 = vpop.permute.xlu0 %703
        %705 = vset.pattern.permute.xlu0 0
        %706 = vperm.xlu0 %705, %v610
        %v707 = vpop.permute.xlu0 %706
        %708 = vset.pattern.permute.xlu0 0
        %709 = vperm.xlu0 %708, %v611
        %v710 = vpop.permute.xlu0 %709
        %711 = vset.pattern.permute.xlu0 0
        %712 = vperm.xlu0 %711, %v612
        %v713 = vpop.permute.xlu0 %712
        %714 = vset.pattern.permute.xlu0 0
        %715 = vperm.xlu0 %714, %v613
        %v716 = vpop.permute.xlu0 %715
        %717 = vset.pattern.permute.xlu0 0
        %718 = vperm.xlu0 %717, %v614
        %v719 = vpop.permute.xlu0 %718
        %720 = vset.pattern.permute.xlu0 0
        %721 = vperm.xlu0 %720, %v615
        %v722 = vpop.permute.xlu0 %721
        %723 = vset.pattern.permute.xlu0 0
        %724 = vperm.xlu0 %723, %v616
        %v725 = vpop.permute.xlu0 %724
        %726 = vset.pattern.permute.xlu0 0
        %727 = vperm.xlu0 %726, %v617
        %v728 = vpop.permute.xlu0 %727
        %729 = vset.pattern.permute.xlu0 0
        %730 = vperm.xlu0 %729, %v618
        %v731 = vpop.permute.xlu0 %730
        %732 = vset.pattern.permute.xlu0 0
        %733 = vperm.xlu0 %732, %v619
        %v734 = vpop.permute.xlu0 %733
        %735 = vset.pattern.permute.xlu0 0
        %736 = vperm.xlu0 %735, %v620
        %v737 = vpop.permute.xlu0 %736
        %738 = vset.pattern.permute.xlu0 0
        %739 = vperm.xlu0 %738, %v621
        %v740 = vpop.permute.xlu0 %739
        %v741 = vlaneseq
        %v742 = vand.u32 %v741, 127
        %v743 = vperm.slane %v695, %v742
        %v744 = vadd.s32 %v742, 4294967288
        %v745 = vperm.slane %v698, %v744
        %vm746 = vcmask 130112
        %v747 = vsel %vm746, %v745, %v743
        %v748 = vperm.slane %v701, %v742
        %v749 = vperm.slane %v704, %v744
        %v750 = vsel %vm746, %v749, %v748
        %v751 = vperm.slane %v707, %v742
        %v752 = vperm.slane %v710, %v744
        %v753 = vsel %vm746, %v752, %v751
        %v754 = vperm.slane %v713, %v742
        %v755 = vperm.slane %v716, %v744
        %v756 = vsel %vm746, %v755, %v754
        %v757 = vperm.slane %v719, %v742
        %v758 = vperm.slane %v722, %v744
        %v759 = vsel %vm746, %v758, %v757
        %v760 = vperm.slane %v725, %v742
        %v761 = vperm.slane %v728, %v744
        %v762 = vsel %vm746, %v761, %v760
        %v763 = vperm.slane %v731, %v742
        %v764 = vperm.slane %v734, %v744
        %v765 = vsel %vm746, %v764, %v763
        %v766 = vperm.slane %v737, %v742
        %v767 = vperm.slane %v740, %v744
        %v768 = vsel %vm746, %v767, %v766
        %vm769 = vcmask 1041409
        %v770 = vsel %vm769, %v750, %v747
        %vm771 = vcmask 1042434
        %v772 = vsel %vm771, %v753, %v770
        %vm773 = vcmask 1043459
        %v774 = vsel %vm773, %v756, %v772
        %vm775 = vcmask 1044484
        %v776 = vsel %vm775, %v759, %v774
        %vm777 = vcmask 1045509
        %v778 = vsel %vm777, %v762, %v776
        %vm779 = vcmask 1046534
        %v780 = vsel %vm779, %v765, %v778
        %vm781 = vcmask 1047559
        %v782 = vsel %vm781, %v768, %v780
        %vm784 = vcmask 130048
        %785 = vst.msk [vmem:[%s424] sm:$0xff] %vm784, %v782
        %802 = vset.pattern.permute.xlu0 1
        %803 = vperm.xlu0 %802, %v624
        %v804 = vpop.permute.xlu0 %803
        %805 = vset.pattern.permute.xlu0 1
        %806 = vperm.xlu0 %805, %v625
        %v807 = vpop.permute.xlu0 %806
        %808 = vset.pattern.permute.xlu0 1
        %809 = vperm.xlu0 %808, %v626
        %v810 = vpop.permute.xlu0 %809
        %811 = vset.pattern.permute.xlu0 1
        %812 = vperm.xlu0 %811, %v627
        %v813 = vpop.permute.xlu0 %812
        %814 = vset.pattern.permute.xlu0 1
        %815 = vperm.xlu0 %814, %v628
        %v816 = vpop.permute.xlu0 %815
        %817 = vset.pattern.permute.xlu0 1
        %818 = vperm.xlu0 %817, %v629
        %v819 = vpop.permute.xlu0 %818
        %820 = vset.pattern.permute.xlu0 1
        %821 = vperm.xlu0 %820, %v630
        %v822 = vpop.permute.xlu0 %821
        %823 = vset.pattern.permute.xlu0 1
        %824 = vperm.xlu0 %823, %v631
        %v825 = vpop.permute.xlu0 %824
        %826 = vset.pattern.permute.xlu0 1
        %827 = vperm.xlu0 %826, %v632
        %v828 = vpop.permute.xlu0 %827
        %829 = vset.pattern.permute.xlu0 1
        %830 = vperm.xlu0 %829, %v633
        %v831 = vpop.permute.xlu0 %830
        %832 = vset.pattern.permute.xlu0 1
        %833 = vperm.xlu0 %832, %v634
        %v834 = vpop.permute.xlu0 %833
        %835 = vset.pattern.permute.xlu0 1
        %836 = vperm.xlu0 %835, %v635
        %v837 = vpop.permute.xlu0 %836
        %838 = vset.pattern.permute.xlu0 1
        %839 = vperm.xlu0 %838, %v636
        %v840 = vpop.permute.xlu0 %839
        %841 = vset.pattern.permute.xlu0 1
        %842 = vperm.xlu0 %841, %v637
        %v843 = vpop.permute.xlu0 %842
        %844 = vset.pattern.permute.xlu0 1
        %845 = vperm.xlu0 %844, %v638
        %v846 = vpop.permute.xlu0 %845
        %847 = vset.pattern.permute.xlu0 1
        %848 = vperm.xlu0 %847, %v639
        %v849 = vpop.permute.xlu0 %848
        %v850 = vperm.slane %v804, %v742
        %v851 = vperm.slane %v807, %v744
        %v852 = vsel %vm746, %v851, %v850
        %v853 = vperm.slane %v810, %v742
        %v854 = vperm.slane %v813, %v744
        %v855 = vsel %vm746, %v854, %v853
        %v856 = vperm.slane %v816, %v742
        %v857 = vperm.slane %v819, %v744
        %v858 = vsel %vm746, %v857, %v856
        %v859 = vperm.slane %v822, %v742
        %v860 = vperm.slane %v825, %v744
        %v861 = vsel %vm746, %v860, %v859
        %v862 = vperm.slane %v828, %v742
        %v863 = vperm.slane %v831, %v744
        %v864 = vsel %vm746, %v863, %v862
        %v865 = vperm.slane %v834, %v742
        %v866 = vperm.slane %v837, %v744
        %v867 = vsel %vm746, %v866, %v865
        %v868 = vperm.slane %v840, %v742
        %v869 = vperm.slane %v843, %v744
        %v870 = vsel %vm746, %v869, %v868
        %v871 = vperm.slane %v846, %v742
        %v872 = vperm.slane %v849, %v744
        %v873 = vsel %vm746, %v872, %v871
        %v874 = vsel %vm769, %v855, %v852
        %v875 = vsel %vm771, %v858, %v874
        %v876 = vsel %vm773, %v861, %v875
        %v877 = vsel %vm775, %v864, %v876
        %v878 = vsel %vm777, %v867, %v877
        %v879 = vsel %vm779, %v870, %v878
        %v880 = vsel %vm781, %v873, %v879
        %882 = vst.msk [vmem:[%s431] sm:$0xff] %vm784, %v880
        %vm883 = vcmask 39936
        %884 = vst.msk [vmem:[%s456] sm:$0xff] %vm883, %v674
        %s885 = smul.u32 %s32, 8
        %v886 = vlaneseq
        %v887 = vshrl.u32 %v886, 7
        %v888 = vstv %s885
        %v889 = vadd.s32 %v888, %v887
        %vm890 = vcmp.lt.s32.totalorder %v889, 12
        %v891 = vld [vmem:[%s452] sm:$0xff]
        %v892 = vsel %vm784, %v782, -inf
        %893 = vmax.xlane.f32.xlu0 %v892
        %v894 = vpop.xlane.xlu0 %893
        %v896 = vperm.slane %v894, 0
        %v897 = vperm.slane %v894, 1
        %v898 = vperm.slane %v894, 2
        %v899 = vperm.slane %v894, 3
        %v900 = vperm.slane %v894, 4
        %v901 = vperm.slane %v894, 5
        %v902 = vperm.slane %v894, 6
        %v903 = vperm.slane %v894, 7
        %v912 = vsub.f32 %v606, %v896
        %v913 = vsub.f32 %v607, %v896
        %v914 = vsub.f32 %v608, %v897
        %v915 = vsub.f32 %v609, %v897
        %v916 = vsub.f32 %v610, %v898
        %v917 = vsub.f32 %v611, %v898
        %v918 = vsub.f32 %v612, %v899
        %v919 = vsub.f32 %v613, %v899
        %v920 = vsub.f32 %v614, %v900
        %v921 = vsub.f32 %v615, %v900
        %v922 = vsub.f32 %v616, %v901
        %v923 = vsub.f32 %v617, %v901
        %v924 = vsub.f32 %v618, %v902
        %v925 = vsub.f32 %v619, %v902
        %v926 = vsub.f32 %v620, %v903
        %v927 = vsub.f32 %v621, %v903
        %v928 = vmul.f32 %v912, 1.442695
        %v929 = vpow.pop %v928
        %v930 = vmul.f32 %v913, 1.442695
        %v931 = vpow.pop %v930
        %v932 = vmul.f32 %v914, 1.442695
        %v933 = vpow.pop %v932
        %v934 = vmul.f32 %v915, 1.442695
        %v935 = vpow.pop %v934
        %v936 = vmul.f32 %v916, 1.442695
        %v937 = vpow.pop %v936
        %v938 = vmul.f32 %v917, 1.442695
        %v939 = vpow.pop %v938
        %v940 = vmul.f32 %v918, 1.442695
        %v941 = vpow.pop %v940
        %v942 = vmul.f32 %v919, 1.442695
        %v943 = vpow.pop %v942
        %v944 = vmul.f32 %v920, 1.442695
        %v945 = vpow.pop %v944
        %v946 = vmul.f32 %v921, 1.442695
        %v947 = vpow.pop %v946
        %v948 = vmul.f32 %v922, 1.442695
        %v949 = vpow.pop %v948
        %v950 = vmul.f32 %v923, 1.442695
        %v951 = vpow.pop %v950
        %v952 = vmul.f32 %v924, 1.442695
        %v953 = vpow.pop %v952
        %v954 = vmul.f32 %v925, 1.442695
        %v955 = vpow.pop %v954
        %v956 = vmul.f32 %v926, 1.442695
        %v957 = vpow.pop %v956
        %v958 = vmul.f32 %v927, 1.442695
        %v959 = vpow.pop %v958
        %976 = vset.pattern.permute.xlu0 0
        %977 = vperm.xlu0 %976, %v929
        %v978 = vpop.permute.xlu0 %977
        %979 = vset.pattern.permute.xlu0 0
        %980 = vperm.xlu0 %979, %v931
        %v981 = vpop.permute.xlu0 %980
        %982 = vset.pattern.permute.xlu0 0
        %983 = vperm.xlu0 %982, %v933
        %v984 = vpop.permute.xlu0 %983
        %985 = vset.pattern.permute.xlu0 0
        %986 = vperm.xlu0 %985, %v935
        %v987 = vpop.permute.xlu0 %986
        %988 = vset.pattern.permute.xlu0 0
        %989 = vperm.xlu0 %988, %v937
        %v990 = vpop.permute.xlu0 %989
        %991 = vset.pattern.permute.xlu0 0
        %992 = vperm.xlu0 %991, %v939
        %v993 = vpop.permute.xlu0 %992
        %994 = vset.pattern.permute.xlu0 0
        %995 = vperm.xlu0 %994, %v941
        %v996 = vpop.permute.xlu0 %995
        %997 = vset.pattern.permute.xlu0 0
        %998 = vperm.xlu0 %997, %v943
        %v999 = vpop.permute.xlu0 %998
        %1000 = vset.pattern.permute.xlu0 0
        %1001 = vperm.xlu0 %1000, %v945
        %v1002 = vpop.permute.xlu0 %1001
        %1003 = vset.pattern.permute.xlu0 0
        %1004 = vperm.xlu0 %1003, %v947
        %v1005 = vpop.permute.xlu0 %1004
        %1006 = vset.pattern.permute.xlu0 0
        %1007 = vperm.xlu0 %1006, %v949
        %v1008 = vpop.permute.xlu0 %1007
        %1009 = vset.pattern.permute.xlu0 0
        %1010 = vperm.xlu0 %1009, %v951
        %v1011 = vpop.permute.xlu0 %1010
        %1012 = vset.pattern.permute.xlu0 0
        %1013 = vperm.xlu0 %1012, %v953
        %v1014 = vpop.permute.xlu0 %1013
        %1015 = vset.pattern.permute.xlu0 0
        %1016 = vperm.xlu0 %1015, %v955
        %v1017 = vpop.permute.xlu0 %1016
        %1018 = vset.pattern.permute.xlu0 0
        %1019 = vperm.xlu0 %1018, %v957
        %v1020 = vpop.permute.xlu0 %1019
        %1021 = vset.pattern.permute.xlu0 0
        %1022 = vperm.xlu0 %1021, %v959
        %v1023 = vpop.permute.xlu0 %1022
        %v1024 = vperm.slane %v978, %v742
        %v1025 = vperm.slane %v981, %v744
        %v1026 = vsel %vm746, %v1025, %v1024
        %v1027 = vperm.slane %v984, %v742
        %v1028 = vperm.slane %v987, %v744
        %v1029 = vsel %vm746, %v1028, %v1027
        %v1030 = vperm.slane %v990, %v742
        %v1031 = vperm.slane %v993, %v744
        %v1032 = vsel %vm746, %v1031, %v1030
        %v1033 = vperm.slane %v996, %v742
        %v1034 = vperm.slane %v999, %v744
        %v1035 = vsel %vm746, %v1034, %v1033
        %v1036 = vperm.slane %v1002, %v742
        %v1037 = vperm.slane %v1005, %v744
        %v1038 = vsel %vm746, %v1037, %v1036
        %v1039 = vperm.slane %v1008, %v742
        %v1040 = vperm.slane %v1011, %v744
        %v1041 = vsel %vm746, %v1040, %v1039
        %v1042 = vperm.slane %v1014, %v742
        %v1043 = vperm.slane %v1017, %v744
        %v1044 = vsel %vm746, %v1043, %v1042
        %v1045 = vperm.slane %v1020, %v742
        %v1046 = vperm.slane %v1023, %v744
        %v1047 = vsel %vm746, %v1046, %v1045
        %v1048 = vsel %vm769, %v1029, %v1026
        %v1049 = vsel %vm771, %v1032, %v1048
        %v1050 = vsel %vm773, %v1035, %v1049
        %v1051 = vsel %vm775, %v1038, %v1050
        %v1052 = vsel %vm777, %v1041, %v1051
        %v1053 = vsel %vm779, %v1044, %v1052
        %v1054 = vsel %vm781, %v1047, %v1053
        %v1056 = vsel %vm784, %v1054, 0.0
        %1057 = vadd.xlane.f32.xlu0 %v1056
        %v1058 = vpop.xlane.xlu0 %1057
        %v1059 = vlog2.pop %v1058
        %v1060 = vmul.f32 %v1059, 0.6931472
        %v1061 = vadd.f32 %v1060, %v894
        %1062 = vset.pattern.permute.xlu0 0
        %1063 = vperm.xlu0 %1062, %v891
        %v1064 = vpop.permute.xlu0 %1063
        %vm1065 = vcmp.eq.s32.totalorder %v742, %v1064
        %v1066 = vsel %vm1065, %v782, 0.0
        %v1067 = vsel %vm784, %v1066, 0.0
        %1068 = vadd.xlane.f32.xlu0 %v1067
        %v1069 = vpop.xlane.xlu0 %1068
        %v1070 = vsub.f32 %v1061, %v1069
        %v1071 = vsel %vm890, %v1070, 0.0
        %vm1072 = vcmask 7168
        %v1073 = vsel %vm1072, %v1071, 0.0
        %1074 = vadd.xlane.f32.xlu0 %v1073
        %v1075 = vpop.xlane.xlu0 %1074
        %v1076 = vrot.slane %v1075, 4
        %v1077 = vadd.f32 %v1075, %v1076
        %v1078 = vrot.slane %v1077, 2
        %v1079 = vadd.f32 %v1077, %v1078
        %v1080 = vrot.slane %v1079, 1
        %v1081 = vadd.f32 %v1079, %v1080
        %s1082 = vtos %v1081
        %v1083 = vsel %vm784, %v880, -inf
        %1084 = vmax.xlane.f32.xlu0 %v1083
        %v1085 = vpop.xlane.xlu0 %1084
        %v1087 = vperm.slane %v1085, 0
        %v1088 = vperm.slane %v1085, 1
        %v1089 = vperm.slane %v1085, 2
        %v1090 = vperm.slane %v1085, 3
        %v1091 = vperm.slane %v1085, 4
        %v1092 = vperm.slane %v1085, 5
        %v1093 = vperm.slane %v1085, 6
        %v1094 = vperm.slane %v1085, 7
        %v1103 = vsub.f32 %v624, %v1087
        %v1104 = vsub.f32 %v625, %v1087
        %v1105 = vsub.f32 %v626, %v1088
        %v1106 = vsub.f32 %v627, %v1088
        %v1107 = vsub.f32 %v628, %v1089
        %v1108 = vsub.f32 %v629, %v1089
        %v1109 = vsub.f32 %v630, %v1090
        %v1110 = vsub.f32 %v631, %v1090
        %v1111 = vsub.f32 %v632, %v1091
        %v1112 = vsub.f32 %v633, %v1091
        %v1113 = vsub.f32 %v634, %v1092
        %v1114 = vsub.f32 %v635, %v1092
        %v1115 = vsub.f32 %v636, %v1093
        %v1116 = vsub.f32 %v637, %v1093
        %v1117 = vsub.f32 %v638, %v1094
        %v1118 = vsub.f32 %v639, %v1094
        %v1119 = vmul.f32 %v1103, 1.442695
        %v1120 = vpow.pop %v1119
        %v1121 = vmul.f32 %v1104, 1.442695
        %v1122 = vpow.pop %v1121
        %v1123 = vmul.f32 %v1105, 1.442695
        %v1124 = vpow.pop %v1123
        %v1125 = vmul.f32 %v1106, 1.442695
        %v1126 = vpow.pop %v1125
        %v1127 = vmul.f32 %v1107, 1.442695
        %v1128 = vpow.pop %v1127
        %v1129 = vmul.f32 %v1108, 1.442695
        %v1130 = vpow.pop %v1129
        %v1131 = vmul.f32 %v1109, 1.442695
        %v1132 = vpow.pop %v1131
        %v1133 = vmul.f32 %v1110, 1.442695
        %v1134 = vpow.pop %v1133
        %v1135 = vmul.f32 %v1111, 1.442695
        %v1136 = vpow.pop %v1135
        %v1137 = vmul.f32 %v1112, 1.442695
        %v1138 = vpow.pop %v1137
        %v1139 = vmul.f32 %v1113, 1.442695
        %v1140 = vpow.pop %v1139
        %v1141 = vmul.f32 %v1114, 1.442695
        %v1142 = vpow.pop %v1141
        %v1143 = vmul.f32 %v1115, 1.442695
        %v1144 = vpow.pop %v1143
        %v1145 = vmul.f32 %v1116, 1.442695
        %v1146 = vpow.pop %v1145
        %v1147 = vmul.f32 %v1117, 1.442695
        %v1148 = vpow.pop %v1147
        %v1149 = vmul.f32 %v1118, 1.442695
        %v1150 = vpow.pop %v1149
        %1167 = vset.pattern.permute.xlu0 1
        %1168 = vperm.xlu0 %1167, %v1120
        %v1169 = vpop.permute.xlu0 %1168
        %1170 = vset.pattern.permute.xlu0 1
        %1171 = vperm.xlu0 %1170, %v1122
        %v1172 = vpop.permute.xlu0 %1171
        %1173 = vset.pattern.permute.xlu0 1
        %1174 = vperm.xlu0 %1173, %v1124
        %v1175 = vpop.permute.xlu0 %1174
        %1176 = vset.pattern.permute.xlu0 1
        %1177 = vperm.xlu0 %1176, %v1126
        %v1178 = vpop.permute.xlu0 %1177
        %1179 = vset.pattern.permute.xlu0 1
        %1180 = vperm.xlu0 %1179, %v1128
        %v1181 = vpop.permute.xlu0 %1180
        %1182 = vset.pattern.permute.xlu0 1
        %1183 = vperm.xlu0 %1182, %v1130
        %v1184 = vpop.permute.xlu0 %1183
        %1185 = vset.pattern.permute.xlu0 1
        %1186 = vperm.xlu0 %1185, %v1132
        %v1187 = vpop.permute.xlu0 %1186
        %1188 = vset.pattern.permute.xlu0 1
        %1189 = vperm.xlu0 %1188, %v1134
        %v1190 = vpop.permute.xlu0 %1189
        %1191 = vset.pattern.permute.xlu0 1
        %1192 = vperm.xlu0 %1191, %v1136
        %v1193 = vpop.permute.xlu0 %1192
        %1194 = vset.pattern.permute.xlu0 1
        %1195 = vperm.xlu0 %1194, %v1138
        %v1196 = vpop.permute.xlu0 %1195
        %1197 = vset.pattern.permute.xlu0 1
        %1198 = vperm.xlu0 %1197, %v1140
        %v1199 = vpop.permute.xlu0 %1198
        %1200 = vset.pattern.permute.xlu0 1
        %1201 = vperm.xlu0 %1200, %v1142
        %v1202 = vpop.permute.xlu0 %1201
        %1203 = vset.pattern.permute.xlu0 1
        %1204 = vperm.xlu0 %1203, %v1144
        %v1205 = vpop.permute.xlu0 %1204
        %1206 = vset.pattern.permute.xlu0 1
        %1207 = vperm.xlu0 %1206, %v1146
        %v1208 = vpop.permute.xlu0 %1207
        %1209 = vset.pattern.permute.xlu0 1
        %1210 = vperm.xlu0 %1209, %v1148
        %v1211 = vpop.permute.xlu0 %1210
        %1212 = vset.pattern.permute.xlu0 1
        %1213 = vperm.xlu0 %1212, %v1150
        %v1214 = vpop.permute.xlu0 %1213
        %v1215 = vperm.slane %v1169, %v742
        %v1216 = vperm.slane %v1172, %v744
        %v1217 = vsel %vm746, %v1216, %v1215
        %v1218 = vperm.slane %v1175, %v742
        %v1219 = vperm.slane %v1178, %v744
        %v1220 = vsel %vm746, %v1219, %v1218
        %v1221 = vperm.slane %v1181, %v742
        %v1222 = vperm.slane %v1184, %v744
        %v1223 = vsel %vm746, %v1222, %v1221
        %v1224 = vperm.slane %v1187, %v742
        %v1225 = vperm.slane %v1190, %v744
        %v1226 = vsel %vm746, %v1225, %v1224
        %v1227 = vperm.slane %v1193, %v742
        %v1228 = vperm.slane %v1196, %v744
        %v1229 = vsel %vm746, %v1228, %v1227
        %v1230 = vperm.slane %v1199, %v742
        %v1231 = vperm.slane %v1202, %v744
        %v1232 = vsel %vm746, %v1231, %v1230
        %v1233 = vperm.slane %v1205, %v742
        %v1234 = vperm.slane %v1208, %v744
        %v1235 = vsel %vm746, %v1234, %v1233
        %v1236 = vperm.slane %v1211, %v742
        %v1237 = vperm.slane %v1214, %v744
        %v1238 = vsel %vm746, %v1237, %v1236
        %v1239 = vsel %vm769, %v1220, %v1217
        %v1240 = vsel %vm771, %v1223, %v1239
        %v1241 = vsel %vm773, %v1226, %v1240
        %v1242 = vsel %vm775, %v1229, %v1241
        %v1243 = vsel %vm777, %v1232, %v1242
        %v1244 = vsel %vm779, %v1235, %v1243
        %v1245 = vsel %vm781, %v1238, %v1244
        %v1247 = vsel %vm784, %v1245, 0.0
        %1248 = vadd.xlane.f32.xlu0 %v1247
        %v1249 = vpop.xlane.xlu0 %1248
        %v1250 = vlog2.pop %v1249
        %v1251 = vmul.f32 %v1250, 0.6931472
        %v1252 = vadd.f32 %v1251, %v1085
        %1253 = vset.pattern.permute.xlu0 1
        %1254 = vperm.xlu0 %1253, %v891
        %v1255 = vpop.permute.xlu0 %1254
        %vm1256 = vcmp.eq.s32.totalorder %v742, %v1255
        %v1257 = vsel %vm1256, %v880, 0.0
        %v1258 = vsel %vm784, %v1257, 0.0
        %1259 = vadd.xlane.f32.xlu0 %v1258
        %v1260 = vpop.xlane.xlu0 %1259
        %v1261 = vsub.f32 %v1252, %v1260
        %v1262 = vsel %vm890, %v1261, 0.0
        %v1263 = vsel %vm1072, %v1262, 0.0
        %1264 = vadd.xlane.f32.xlu0 %v1263
        %v1265 = vpop.xlane.xlu0 %1264
        %v1266 = vrot.slane %v1265, 4
        %v1267 = vadd.f32 %v1265, %v1266
        %v1268 = vrot.slane %v1267, 2
        %v1269 = vadd.f32 %v1267, %v1268
        %v1270 = vrot.slane %v1269, 1
        %v1271 = vadd.f32 %v1269, %v1270
        %s1272 = vtos %v1271
        %v1273 = vsel %vm883, %v674, -inf
        %1274 = vmax.xlane.f32.xlu0 %v1273
        %v1275 = vpop.xlane.xlu0 %1274
        %v1276 = vsub.f32 %v674, %v1275
        %v1277 = vmul.f32 %v1276, 1.442695
        %v1278 = vpow.pop %v1277
        %v1279 = vsel %vm883, %v1278, 0.0
        %1280 = vadd.xlane.f32.xlu0 %v1279
        %v1281 = vpop.xlane.xlu0 %1280
        %v1282 = vlog2.pop %v1281
        %v1283 = vmul.f32 %v1282, 0.6931472
        %v1284 = vadd.f32 %v1283, %v1275
        %1285 = vset.pattern.permute.xlu0 2
        %1286 = vperm.xlu0 %1285, %v891
        %v1287 = vpop.permute.xlu0 %1286
        %vm1288 = vcmp.eq.s32.totalorder %v742, %v1287
        %v1289 = vsel %vm1288, %v674, 0.0
        %v1290 = vsel %vm883, %v1289, 0.0
        %1291 = vadd.xlane.f32.xlu0 %v1290
        %v1292 = vpop.xlane.xlu0 %1291
        %v1293 = vsub.f32 %v1284, %v1292
        %v1294 = vsel %vm890, %v1293, 0.0
        %v1295 = vsel %vm1072, %v1294, 0.0
        %1296 = vadd.xlane.f32.xlu0 %v1295
        %v1297 = vpop.xlane.xlu0 %1296
        %v1298 = vrot.slane %v1297, 4
        %v1299 = vadd.f32 %v1297, %v1298
        %v1300 = vrot.slane %v1299, 2
        %v1301 = vadd.f32 %v1299, %v1300
        %v1302 = vrot.slane %v1301, 1
        %v1303 = vadd.f32 %v1301, %v1302
        %s1304 = vtos %v1303
        %vm1305 = vcmp.eq.s32.totalorder %v742, 0
        %vm1306 = vcmp.eq.s32.totalorder %v742, 1
        %vm1307 = vcmp.eq.s32.totalorder %v742, 2
        %v1308 = vstv %s1304
        %v1309 = vsel %vm1307, %v1308, 0.0
        %v1310 = vstv %s1272
        %v1311 = vsel %vm1306, %v1310, %v1309
        %v1312 = vstv %s1082
        %v1313 = vsel %vm1305, %v1312, %v1311
        %1314 = vst [vmem:[%s443] sm:$0x1] %v1313
        %s1315 = sand.u32 %s202, 1
        %s1316 = scalar_lea.sflag [#allocation4], %s1315
        %s1317 = sand.u32 %s202, 1
        %s1318 = smul.addr %s1317, 8
        %s1319 = scalar_lea.vmem [#allocation7], %s1318
        %s1320 = sand.u32 %s32, 1
        %s1321 = scalar_lea.sflag [#allocation9], %s1320
        %s1322 = sand.u32 %s228, 1
        %s1323 = smul.addr %s1322, 8
        %s1324 = scalar_lea.vmem [#allocation8], %s1323
        %p1325 = scmp.lt.s32.totalorder %s32, 1
        %s1326 = scalar_select %p1325, %s32, 1
        %s1327 = smul.addr %s1326, 8
        %s1328 = scalar_lea.vmem %s9, %s1327
        %s1329 = sand.u32 %s32, 1
        %s1330 = scalar_lea.sflag [#allocation9], %s1329
        %s1331 = sand.u32 %s280, 1
        %s1332 = scalar_lea.vmem [#allocation10], %s1331
        // Predicated region
        $region57: #{tpu_custom_call.1} parent=47 // pred_check
          %p1333 = pneg %p212
        $region58: #{tpu_custom_call.1} parent=47 // pred_check_branch
          %1335 = sbr.rel (%p1333) target = $region60
        $region59: #{tpu_custom_call.1} parent=47 // pred_region
          %1337 = vsyncadd %s1316, 0
          %s1338 = smul.addr %s32, 8
          %s1339 = scalar_lea.hbm %s7, %s1338
          %s1341 = sshll.u32 %s1319, 4
          %s1342 = int_to_ptr.vmem [resolvable:$true] %s1341
          %s1343 = sshll.u32 %s1339, 4
          %s1344 = int_to_ptr.hbm [resolvable:$true] %s1343
          %1346 = dma.vmem_to_hbm [thread:$0]  %s1342, 128, %s1344, %s1316
        $region60: #{tpu_custom_call.1} parent=47 // pred_fallthru
          _
        // Predicated region
        $region61: #{tpu_custom_call.1} parent=47 // pred_check
          %p1347 = pneg %p238
        $region62: #{tpu_custom_call.1} parent=47 // pred_check_branch
          %1349 = sbr.rel (%p1347) target = $region64
        $region63: #{tpu_custom_call.1} parent=47 // pred_region
          %1351 = vsyncadd %s1321, 0
          %s1352 = smul.addr %s32, 8
          %s1353 = scalar_lea.hbm %s8, %s1352
          %s1355 = sshll.u32 %s1324, 4
          %s1356 = int_to_ptr.vmem [resolvable:$true] %s1355
          %s1357 = sshll.u32 %s1353, 4
          %s1358 = int_to_ptr.hbm [resolvable:$true] %s1357
          %1360 = dma.vmem_to_hbm [thread:$0]  %s1356, 128, %s1358, %s1321
        $region64: #{tpu_custom_call.1} parent=47 // pred_fallthru
          _
        // Predicated region
        $region65: #{tpu_custom_call.1} parent=47 // pred_check
          %p1361 = pneg %p264
        $region66: #{tpu_custom_call.1} parent=47 // pred_check_branch
          %1363 = sbr.rel (%p1361) target = $region68
        $region67: #{tpu_custom_call.1} parent=47 // pred_region
          _
        $region68: #{tpu_custom_call.1} parent=47 // pred_fallthru
          _
        // Predicated region
        $region69: #{tpu_custom_call.1} parent=47 // pred_check
          %p1364 = pneg %p290
        $region70: #{tpu_custom_call.1} parent=47 // pred_check_branch
          %1366 = sbr.rel (%p1364) target = $region72
        $region71: #{tpu_custom_call.1} parent=47 // pred_region
          %1368 = vsyncadd %s1330, 0
          %s1369 = scalar_lea.hbm %s10, %s32
          %s1371 = sshll.u32 %s1332, 4
          %s1372 = int_to_ptr.vmem [resolvable:$true] %s1371
          %s1373 = sshll.u32 %s1369, 4
          %s1374 = int_to_ptr.hbm [resolvable:$true] %s1373
          %1376 = dma.vmem_to_hbm [thread:$0]  %s1372, 16, %s1374, %s1330
        $region72: #{tpu_custom_call.1} parent=47 // pred_fallthru
          _
      $region48: #{tpu_custom_call.1} parent=5 // pred_fallthru
        _
      %p1377 = scmp.le.s32.totalorder 2, %s27
      // Predicated region
      $region73: #{tpu_custom_call.1} parent=5 // pred_check
        %p1378 = pneg %p1377
      $region74: #{tpu_custom_call.1} parent=5 // pred_check_branch
        %1380 = sbr.rel (%p1378) target = $region76
      $region75: #{tpu_custom_call.1} parent=5 // pred_region
        %s1381 = ssub.s32 %s27, 2
        // Predicated region
        $region77: #{tpu_custom_call.1} parent=75 // pred_check
          %p1382 = pneg %p218
        $region78: #{tpu_custom_call.1} parent=75 // pred_check_branch
          %1384 = sbr.rel (%p1382) target = $region80
        $region79: #{tpu_custom_call.1} parent=75 // pred_region
          %s1385 = sand.u32 %s203, 1
          %s1386 = scalar_lea.sflag [#allocation4], %s1385
          %s1387 = sand.u32 %s203, 1
          %s1388 = smul.addr %s1387, 8
          %s1389 = scalar_lea.vmem [#allocation7], %s1388
          %1391 = dma.done %s1386, 128
        $region80: #{tpu_custom_call.1} parent=75 // pred_fallthru
          _
        // Predicated region
        $region81: #{tpu_custom_call.1} parent=75 // pred_check
          %p1392 = pneg %p244
        $region82: #{tpu_custom_call.1} parent=75 // pred_check_branch
          %1394 = sbr.rel (%p1392) target = $region84
        $region83: #{tpu_custom_call.1} parent=75 // pred_region
          %s1395 = sand.u32 %s33, 1
          %s1396 = scalar_lea.sflag [#allocation9], %s1395
          %s1397 = sand.u32 %s229, 1
          %s1398 = smul.addr %s1397, 8
          %s1399 = scalar_lea.vmem [#allocation8], %s1398
          %1401 = dma.done %s1396, 128
        $region84: #{tpu_custom_call.1} parent=75 // pred_fallthru
          _
        // Predicated region
        $region85: #{tpu_custom_call.1} parent=75 // pred_check
          %p1402 = pneg %p270
        $region86: #{tpu_custom_call.1} parent=75 // pred_check_branch
          %1404 = sbr.rel (%p1402) target = $region88
        $region87: #{tpu_custom_call.1} parent=75 // pred_region
          %p1405 = scmp.lt.s32.totalorder %s33, 1
          %s1406 = scalar_select %p1405, %s33, 1
          %s1407 = smul.addr %s1406, 8
          %s1408 = scalar_lea.vmem %s9, %s1407
        $region88: #{tpu_custom_call.1} parent=75 // pred_fallthru
          _
        // Predicated region
        $region89: #{tpu_custom_call.1} parent=75 // pred_check
          %p1409 = pneg %p296
        $region90: #{tpu_custom_call.1} parent=75 // pred_check_branch
          %1411 = sbr.rel (%p1409) target = $region92
        $region91: #{tpu_custom_call.1} parent=75 // pred_region
          %s1412 = sand.u32 %s33, 1
          %s1413 = scalar_lea.sflag [#allocation9], %s1412
          %s1414 = sand.u32 %s281, 1
          %s1415 = scalar_lea.vmem [#allocation10], %s1414
          %1417 = dma.done %s1413, 16
        $region92: #{tpu_custom_call.1} parent=75 // pred_fallthru
          _
      $region76: #{tpu_custom_call.1} parent=5 // pred_fallthru
        _
    $region6: #{tpu_custom_call.1} parent=1 // loop_footer
      %s31 = sadd.s32 1, %s27
    $region7: #{tpu_custom_call.1} parent=1 // loop_footer_branch
      %26 = sbr.rel target = $region3
    $region8: #{tpu_custom_call.1} parent=1 // loop_exit
      _
    %1418 = vsyncpa [#allocation3], 1
    %s1419 = scalar_lea.sflag [#allocation3], 1
    %1420 = vsyncpa %s1419, 1
    %1421 = vsyncpa [#allocation4], 1
    %s1422 = scalar_lea.sflag [#allocation4], 1
    %1423 = vsyncpa %s1422, 1
    %1424 = vsyncpa [#allocation9], 1
    %s1425 = scalar_lea.sflag [#allocation9], 1
    %1426 = vsyncpa %s1425, 1
    %1427 = vsyncpa [#allocation5], 1
    %s1428 = scalar_lea.sflag [#allocation5], 1
    %1429 = vsyncpa %s1428, 1

</llo_original>
